<compile_context>
chip_gen: v7x
topology: tpu7x:2x2x1
jax: 0.10.0
libtpu: 0.0.40
codegen_flags: <defaults>
</compile_context>

<pallas_src>
import functools

import jax
import jax.numpy as jnp
from jax.experimental import pallas as pl
from jax.experimental.pallas import tpu as pltpu

KH = KW = 3  # 3x3 convs, stride 1, padding 1 (PyTorch Conv2d semantics)


def _im2col_3x3(xp, NB, H, W, C):
    """xp: (NB, H+2, W+2, C) zero-padded -> (NB*H*W, 9*C), tap order (kh, kw, cin)."""
    cols = []
    for kh in range(KH):
        for kw in range(KW):
            cols.append(xp[:, kh:kh + H, kw:kw + W, :])     # (NB, H, W, C) static slice
    patches = jnp.concatenate(cols, axis=-1)                # (NB, H, W, 9*C) lane concat
    return patches.reshape(NB * H * W, KH * KW * C)


def _residual_block_kernel(x_ref, w1_ref, b1_ref, w2_ref, b2_ref, o_ref,
                           xp_ref, yp_ref):
    """NB images per grid step.

    x_ref : (NB, H, W, C)        input block (unpadded, NHWC)
    w*_ref: (9*C, C)             conv weights in im2col layout (kh, kw, cin) x cout
    b*_ref: (1, C)               biases
    o_ref : (NB, H*W, C)         output pixels (lane dim = channels)
    xp_ref: (NB, H+2, W+2, C)    VMEM scratch: zero-padded input
    yp_ref: (NB, H+2, W+2, C)    VMEM scratch: zero-padded conv1 output
    """
    NB, H, W, C = x_ref.shape

    # Re-zero the padded scratch rings each step (cheap; keeps the border zero
    # regardless of how the "parallel" batch axis is sharded across cores).
    xp_ref[...] = jnp.zeros(xp_ref.shape, jnp.float32)
    yp_ref[...] = jnp.zeros(yp_ref.shape, jnp.float32)

    x = x_ref[...]                                          # (NB, H, W, C)
    xp_ref[:, pl.ds(1, H), pl.ds(1, W), :] = x

    # ---- conv1 + bias + ReLU: ONE matmul, M = NB*H*W, K = 9*C ----
    p1 = _im2col_3x3(xp_ref[...], NB, H, W, C)              # (NB*H*W, 9C)
    y1 = jnp.dot(p1, w1_ref[...], preferred_element_type=jnp.float32)
    y1 = jnp.maximum(y1 + b1_ref[...], 0.0)                 # (NB*H*W, C)

    # PyTorch zero-pads conv1's OUTPUT before conv2.
    yp_ref[:, pl.ds(1, H), pl.ds(1, W), :] = y1.reshape(NB, H, W, C)

    # ---- conv2 + bias, residual add, final ReLU ----
    p2 = _im2col_3x3(yp_ref[...], NB, H, W, C)              # (NB*H*W, 9C)
    z = jnp.dot(p2, w2_ref[...], preferred_element_type=jnp.float32) + b2_ref[...]
    skip = x.reshape(NB * H * W, C)                         # lane dim untouched
    out = jnp.maximum(z + skip, 0.0)
    o_ref[...] = out.reshape(NB, H * W, C).astype(o_ref.dtype)


@functools.partial(jax.jit, static_argnames=("images_per_step",))
def residual_block_forward(x_nchw, w1_oihw, b1, w2_oihw, b2, *, images_per_step=8):
    """ResidualBlock.forward: relu(conv2(relu(conv1(x))) + x). NCHW in/out."""
    N, C, H, W = x_nchw.shape
    NB = min(images_per_step, N)
    n_blocks = pl.cdiv(N, NB)
    N_pad = n_blocks * NB

    # Layout glue (once per call; see TODOs about hoisting out of the hot path).
    x_nhwc = jnp.transpose(x_nchw, (0, 2, 3, 1))                        # NCHW -> NHWC
    if N_pad != N:
        x_nhwc = jnp.pad(x_nhwc, ((0, N_pad - N), (0, 0), (0, 0), (0, 0)))
    w1 = jnp.transpose(w1_oihw, (2, 3, 1, 0)).reshape(KH * KW * C, C)   # OIHW -> (9C, C)
    w2 = jnp.transpose(w2_oihw, (2, 3, 1, 0)).reshape(KH * KW * C, C)
    b1_2d = b1.reshape(1, C)
    b2_2d = b2.reshape(1, C)

    flops = 2 * 2 * N_pad * H * W * (KH * KW * C) * C                   # two convs
    bytes_accessed = 4 * (2 * N_pad * H * W * C + 2 * KH * KW * C * C + 2 * C)

    out_flat = pl.pallas_call(
        _residual_block_kernel,
        out_shape=jax.ShapeDtypeStruct((N_pad, H * W, C), jnp.float32),
        grid_spec=pltpu.PrefetchScalarGridSpec(
            num_scalar_prefetch=0,
            grid=(n_blocks,),
            in_specs=[
                pl.BlockSpec((NB, H, W, C), lambda n: (n, 0, 0, 0)),
                pl.BlockSpec((KH * KW * C, C), lambda n: (0, 0)),       # resident
                pl.BlockSpec((1, C), lambda n: (0, 0)),
                pl.BlockSpec((KH * KW * C, C), lambda n: (0, 0)),       # resident
                pl.BlockSpec((1, C), lambda n: (0, 0)),
            ],
            out_specs=pl.BlockSpec((NB, H * W, C), lambda n: (n, 0, 0)),
            scratch_shapes=[
                pltpu.VMEM((NB, H + 2, W + 2, C), jnp.float32),
                pltpu.VMEM((NB, H + 2, W + 2, C), jnp.float32),
            ],
        ),
        compiler_params=pltpu.CompilerParams(
            dimension_semantics=("parallel",),          # megacore-shard batch blocks
            vmem_limit_bytes=32 * 1024 * 1024,          # safe on v5e/v6e/v7x at these tiles
        ),
        cost_estimate=pl.CostEstimate(flops=flops, transcendentals=0,
                                      bytes_accessed=bytes_accessed),
    )(x_nhwc, w1, b1_2d, w2, b2_2d)

    out_nhwc = out_flat.reshape(N_pad, H, W, C)[:N]
    return jnp.transpose(out_nhwc, (0, 3, 1, 2))                        # NHWC -> NCHW


def _xla_reference(x, w1, b1, w2, b2):
    """Same semantics as PyTorch ResidualBlock.forward, via XLA convs."""
    dn = ("NCHW", "OIHW", "NCHW")
    pad = [(1, 1), (1, 1)]
    out = jax.lax.conv_general_dilated(x, w1, (1, 1), pad, dimension_numbers=dn)
    out = jnp.maximum(out + b1[None, :, None, None], 0.0)
    out = jax.lax.conv_general_dilated(out, w2, (1, 1), pad, dimension_numbers=dn)
    return jnp.maximum(out + b2[None, :, None, None] + x, 0.0)


if __name__ == "__main__":
    # Small deterministic setup consistent with ResidualBlock(channels) on an
    # 8x8 (Leela chess) board.
    N, C, H, W = 2, 32, 8, 8

    key = jax.random.PRNGKey(0)
    kx, k1, kb1, k2, kb2 = jax.random.split(key, 5)
    x = jax.random.normal(kx, (N, C, H, W), dtype=jnp.float32)
    w1 = jax.random.normal(k1, (C, C, KH, KW), dtype=jnp.float32) * 0.1
    b1 = jax.random.normal(kb1, (C,), dtype=jnp.float32) * 0.1
    w2 = jax.random.normal(k2, (C, C, KH, KW), dtype=jnp.float32) * 0.1
    b2 = jax.random.normal(kb2, (C,), dtype=jnp.float32) * 0.1

    out = residual_block_forward(x, w1, b1, w2, b2)
    out = jax.block_until_ready(out)

    ref = _xla_reference(x, w1, b1, w2, b2)
    assert out.shape == (N, C, H, W)
    assert jnp.allclose(out, ref, atol=2e-3, rtol=2e-3), float(
        jnp.max(jnp.abs(out - ref)))

    print("KERNEL_OK")
</pallas_src>

<mosaic_0001>
module attributes {stable_mosaic.version = 11 : i64} {
  func.func @_residual_block_kernel(%arg0: i32, %arg1: memref<2x8x8x32xf32, #tpu.memory_space<vmem>>, %arg2: memref<288x32xf32, #tpu.memory_space<vmem>>, %arg3: memref<1x32xf32, #tpu.memory_space<vmem>>, %arg4: memref<288x32xf32, #tpu.memory_space<vmem>>, %arg5: memref<1x32xf32, #tpu.memory_space<vmem>>, %arg6: memref<2x64x32xf32, #tpu.memory_space<vmem>>, %arg7: memref<2x10x10x32xf32, #tpu.memory_space<vmem>>, %arg8: memref<2x10x10x32xf32, #tpu.memory_space<vmem>>) attributes {dimension_semantics = [#tpu.dimension_semantics<parallel>], iteration_bounds = array<i64: 1>, scalar_prefetch = 0 : i64, scratch_operands = 2 : i64, tpu.core_type = #tpu.core_type<tc>, window_params = [{transform_indices = @transform_0, window_bounds = array<i64: 2, 8, 8, 32>}, {pipeline_mode = #tpu.pipeline_mode<synchronous>, transform_indices = @transform_1, window_bounds = array<i64: 288, 32>}, {pipeline_mode = #tpu.pipeline_mode<synchronous>, transform_indices = @transform_2, window_bounds = array<i64: 1, 32>}, {pipeline_mode = #tpu.pipeline_mode<synchronous>, transform_indices = @transform_3, window_bounds = array<i64: 288, 32>}, {pipeline_mode = #tpu.pipeline_mode<synchronous>, transform_indices = @transform_4, window_bounds = array<i64: 1, 32>}, {transform_indices = @transform_5, window_bounds = array<i64: 2, 64, 32>}]} {
    %cst = arith.constant 0.000000e+00 : f32
    %0 = vector.broadcast %cst : f32 to vector<2x10x10x32xf32>
    %c0 = arith.constant 0 : index
    %c0_0 = arith.constant 0 : index
    %c0_1 = arith.constant 0 : index
    %c0_2 = arith.constant 0 : index
    %1 = vector.load %arg7[%c0, %c0_0, %c0_1, %c0_2] : memref<2x10x10x32xf32, #tpu.memory_space<vmem>>, vector<2x10x10x32xf32>
    tpu.vector_store %arg7[%c0, %c0_0, %c0_1, %c0_2], %0 {strides = array<i32>} : memref<2x10x10x32xf32, #tpu.memory_space<vmem>>, vector<2x10x10x32xf32>,
    %cst_3 = arith.constant 0.000000e+00 : f32
    %2 = vector.broadcast %cst_3 : f32 to vector<2x10x10x32xf32>
    %c0_4 = arith.constant 0 : index
    %c0_5 = arith.constant 0 : index
    %c0_6 = arith.constant 0 : index
    %c0_7 = arith.constant 0 : index
    %3 = vector.load %arg8[%c0_4, %c0_5, %c0_6, %c0_7] : memref<2x10x10x32xf32, #tpu.memory_space<vmem>>, vector<2x10x10x32xf32>
    tpu.vector_store %arg8[%c0_4, %c0_5, %c0_6, %c0_7], %2 {strides = array<i32>} : memref<2x10x10x32xf32, #tpu.memory_space<vmem>>, vector<2x10x10x32xf32>,
    %c0_8 = arith.constant 0 : index
    %c0_9 = arith.constant 0 : index
    %c0_10 = arith.constant 0 : index
    %c0_11 = arith.constant 0 : index
    %4 = vector.load %arg1[%c0_8, %c0_9, %c0_10, %c0_11] : memref<2x8x8x32xf32, #tpu.memory_space<vmem>>, vector<2x8x8x32xf32>
    %c0_12 = arith.constant 0 : index
    %c1 = arith.constant 1 : index
    %c1_13 = arith.constant 1 : index
    %c0_14 = arith.constant 0 : index
    %5 = vector.load %arg7[%c0_12, %c1, %c1_13, %c0_14] : memref<2x10x10x32xf32, #tpu.memory_space<vmem>>, vector<2x8x8x32xf32>
    tpu.vector_store %arg7[%c0_12, %c1, %c1_13, %c0_14], %4 {strides = array<i32>} : memref<2x10x10x32xf32, #tpu.memory_space<vmem>>, vector<2x8x8x32xf32>,
    %c0_15 = arith.constant 0 : index
    %c0_16 = arith.constant 0 : index
    %c0_17 = arith.constant 0 : index
    %c0_18 = arith.constant 0 : index
    %6 = vector.load %arg7[%c0_15, %c0_16, %c0_17, %c0_18] : memref<2x10x10x32xf32, #tpu.memory_space<vmem>>, vector<2x10x10x32xf32>
    %7 = vector.extract_strided_slice %6 {offsets = [0, 0, 0, 0], sizes = [2, 8, 8, 32], strides = [1, 1, 1, 1]} : vector<2x10x10x32xf32> to vector<2x8x8x32xf32>
    %8 = vector.extract_strided_slice %6 {offsets = [0, 0, 1, 0], sizes = [2, 8, 8, 32], strides = [1, 1, 1, 1]} : vector<2x10x10x32xf32> to vector<2x8x8x32xf32>
    %9 = vector.extract_strided_slice %6 {offsets = [0, 0, 2, 0], sizes = [2, 8, 8, 32], strides = [1, 1, 1, 1]} : vector<2x10x10x32xf32> to vector<2x8x8x32xf32>
    %10 = vector.extract_strided_slice %6 {offsets = [0, 1, 0, 0], sizes = [2, 8, 8, 32], strides = [1, 1, 1, 1]} : vector<2x10x10x32xf32> to vector<2x8x8x32xf32>
    %11 = vector.extract_strided_slice %6 {offsets = [0, 1, 1, 0], sizes = [2, 8, 8, 32], strides = [1, 1, 1, 1]} : vector<2x10x10x32xf32> to vector<2x8x8x32xf32>
    %12 = vector.extract_strided_slice %6 {offsets = [0, 1, 2, 0], sizes = [2, 8, 8, 32], strides = [1, 1, 1, 1]} : vector<2x10x10x32xf32> to vector<2x8x8x32xf32>
    %13 = vector.extract_strided_slice %6 {offsets = [0, 2, 0, 0], sizes = [2, 8, 8, 32], strides = [1, 1, 1, 1]} : vector<2x10x10x32xf32> to vector<2x8x8x32xf32>
    %14 = vector.extract_strided_slice %6 {offsets = [0, 2, 1, 0], sizes = [2, 8, 8, 32], strides = [1, 1, 1, 1]} : vector<2x10x10x32xf32> to vector<2x8x8x32xf32>
    %15 = vector.extract_strided_slice %6 {offsets = [0, 2, 2, 0], sizes = [2, 8, 8, 32], strides = [1, 1, 1, 1]} : vector<2x10x10x32xf32> to vector<2x8x8x32xf32>
    %16 = tpu.concatenate %7, %8, %9, %10, %11, %12, %13, %14, %15 in 3 : vector<2x8x8x32xf32>, vector<2x8x8x32xf32>, vector<2x8x8x32xf32>, vector<2x8x8x32xf32>, vector<2x8x8x32xf32>, vector<2x8x8x32xf32>, vector<2x8x8x32xf32>, vector<2x8x8x32xf32>, vector<2x8x8x32xf32> -> vector<2x8x8x288xf32>
    %17 = vector.shape_cast %16 : vector<2x8x8x288xf32> to vector<128x288xf32>
    %c0_19 = arith.constant 0 : index
    %c0_20 = arith.constant 0 : index
    %18 = vector.load %arg2[%c0_19, %c0_20] : memref<288x32xf32, #tpu.memory_space<vmem>>, vector<288x32xf32>
    %cst_21 = arith.constant dense<0.000000e+00> : vector<128x32xf32>
    %19 = tpu.matmul %17, %18, %cst_21 {dimension_numbers = #tpu.dot_dimension_numbers<[1], [0], [0], [1], [0, 0, 1, 1], [], []>} : vector<128x288xf32>, vector<288x32xf32>, vector<128x32xf32> -> vector<128x32xf32>
    %c0_22 = arith.constant 0 : index
    %c0_23 = arith.constant 0 : index
    %20 = vector.load %arg3[%c0_22, %c0_23] : memref<1x32xf32, #tpu.memory_space<vmem>>, vector<1x32xf32>
    %21 = vector.broadcast %20 : vector<1x32xf32> to vector<128x32xf32>
    %22 = arith.addf %19, %21 : vector<128x32xf32>
    %cst_24 = arith.constant 0.000000e+00 : f32
    %23 = vector.broadcast %cst_24 : f32 to vector<128x32xf32>
    %24 = arith.maximumf %22, %23 : vector<128x32xf32>
    %25 = vector.shape_cast %24 : vector<128x32xf32> to vector<2x8x8x32xf32>
    %c0_25 = arith.constant 0 : index
    %c1_26 = arith.constant 1 : index
    %c1_27 = arith.constant 1 : index
    %c0_28 = arith.constant 0 : index
    %26 = vector.load %arg8[%c0_25, %c1_26, %c1_27, %c0_28] : memref<2x10x10x32xf32, #tpu.memory_space<vmem>>, vector<2x8x8x32xf32>
    tpu.vector_store %arg8[%c0_25, %c1_26, %c1_27, %c0_28], %25 {strides = array<i32>} : memref<2x10x10x32xf32, #tpu.memory_space<vmem>>, vector<2x8x8x32xf32>,
    %c0_29 = arith.constant 0 : index
    %c0_30 = arith.constant 0 : index
    %c0_31 = arith.constant 0 : index
    %c0_32 = arith.constant 0 : index
    %27 = vector.load %arg8[%c0_29, %c0_30, %c0_31, %c0_32] : memref<2x10x10x32xf32, #tpu.memory_space<vmem>>, vector<2x10x10x32xf32>
    %28 = vector.extract_strided_slice %27 {offsets = [0, 0, 0, 0], sizes = [2, 8, 8, 32], strides = [1, 1, 1, 1]} : vector<2x10x10x32xf32> to vector<2x8x8x32xf32>
    %29 = vector.extract_strided_slice %27 {offsets = [0, 0, 1, 0], sizes = [2, 8, 8, 32], strides = [1, 1, 1, 1]} : vector<2x10x10x32xf32> to vector<2x8x8x32xf32>
    %30 = vector.extract_strided_slice %27 {offsets = [0, 0, 2, 0], sizes = [2, 8, 8, 32], strides = [1, 1, 1, 1]} : vector<2x10x10x32xf32> to vector<2x8x8x32xf32>
    %31 = vector.extract_strided_slice %27 {offsets = [0, 1, 0, 0], sizes = [2, 8, 8, 32], strides = [1, 1, 1, 1]} : vector<2x10x10x32xf32> to vector<2x8x8x32xf32>
    %32 = vector.extract_strided_slice %27 {offsets = [0, 1, 1, 0], sizes = [2, 8, 8, 32], strides = [1, 1, 1, 1]} : vector<2x10x10x32xf32> to vector<2x8x8x32xf32>
    %33 = vector.extract_strided_slice %27 {offsets = [0, 1, 2, 0], sizes = [2, 8, 8, 32], strides = [1, 1, 1, 1]} : vector<2x10x10x32xf32> to vector<2x8x8x32xf32>
    %34 = vector.extract_strided_slice %27 {offsets = [0, 2, 0, 0], sizes = [2, 8, 8, 32], strides = [1, 1, 1, 1]} : vector<2x10x10x32xf32> to vector<2x8x8x32xf32>
    %35 = vector.extract_strided_slice %27 {offsets = [0, 2, 1, 0], sizes = [2, 8, 8, 32], strides = [1, 1, 1, 1]} : vector<2x10x10x32xf32> to vector<2x8x8x32xf32>
    %36 = vector.extract_strided_slice %27 {offsets = [0, 2, 2, 0], sizes = [2, 8, 8, 32], strides = [1, 1, 1, 1]} : vector<2x10x10x32xf32> to vector<2x8x8x32xf32>
    %37 = tpu.concatenate %28, %29, %30, %31, %32, %33, %34, %35, %36 in 3 : vector<2x8x8x32xf32>, vector<2x8x8x32xf32>, vector<2x8x8x32xf32>, vector<2x8x8x32xf32>, vector<2x8x8x32xf32>, vector<2x8x8x32xf32>, vector<2x8x8x32xf32>, vector<2x8x8x32xf32>, vector<2x8x8x32xf32> -> vector<2x8x8x288xf32>
    %38 = vector.shape_cast %37 : vector<2x8x8x288xf32> to vector<128x288xf32>
    %c0_33 = arith.constant 0 : index
    %c0_34 = arith.constant 0 : index
    %39 = vector.load %arg4[%c0_33, %c0_34] : memref<288x32xf32, #tpu.memory_space<vmem>>, vector<288x32xf32>
    %cst_35 = arith.constant dense<0.000000e+00> : vector<128x32xf32>
    %40 = tpu.matmul %38, %39, %cst_35 {dimension_numbers = #tpu.dot_dimension_numbers<[1], [0], [0], [1], [0, 0, 1, 1], [], []>} : vector<128x288xf32>, vector<288x32xf32>, vector<128x32xf32> -> vector<128x32xf32>
    %c0_36 = arith.constant 0 : index
    %c0_37 = arith.constant 0 : index
    %41 = vector.load %arg5[%c0_36, %c0_37] : memref<1x32xf32, #tpu.memory_space<vmem>>, vector<1x32xf32>
    %42 = vector.broadcast %41 : vector<1x32xf32> to vector<128x32xf32>
    %43 = arith.addf %40, %42 : vector<128x32xf32>
    %44 = vector.shape_cast %4 : vector<2x8x8x32xf32> to vector<128x32xf32>
    %45 = arith.addf %43, %44 : vector<128x32xf32>
    %cst_38 = arith.constant 0.000000e+00 : f32
    %46 = vector.broadcast %cst_38 : f32 to vector<128x32xf32>
    %47 = arith.maximumf %45, %46 : vector<128x32xf32>
    %48 = vector.shape_cast %47 : vector<128x32xf32> to vector<2x64x32xf32>
    %c0_39 = arith.constant 0 : index
    %c0_40 = arith.constant 0 : index
    %c0_41 = arith.constant 0 : index
    %49 = vector.load %arg6[%c0_39, %c0_40, %c0_41] : memref<2x64x32xf32, #tpu.memory_space<vmem>>, vector<2x64x32xf32>
    tpu.vector_store %arg6[%c0_39, %c0_40, %c0_41], %48 {strides = array<i32>} : memref<2x64x32xf32, #tpu.memory_space<vmem>>, vector<2x64x32xf32>,
    return
  }
  func.func @transform_0(%arg0: i32) -> (i32, i32, i32, i32) {
    %c0_i32 = arith.constant 0 : i32
    %c0_i32_0 = arith.constant 0 : i32
    %c0_i32_1 = arith.constant 0 : i32
    %c0_i32_2 = arith.constant 0 : i32
    return %arg0, %c0_i32, %c0_i32_0, %c0_i32_1 : i32, i32, i32, i32
  }
  func.func @transform_1(%arg0: i32) -> (i32, i32) {
    %c0_i32 = arith.constant 0 : i32
    %c0_i32_0 = arith.constant 0 : i32
    %c0_i32_1 = arith.constant 0 : i32
    return %c0_i32, %c0_i32_0 : i32, i32
  }
  func.func @transform_2(%arg0: i32) -> (i32, i32) {
    %c0_i32 = arith.constant 0 : i32
    %c0_i32_0 = arith.constant 0 : i32
    %c0_i32_1 = arith.constant 0 : i32
    return %c0_i32, %c0_i32_0 : i32, i32
  }
  func.func @transform_3(%arg0: i32) -> (i32, i32) {
    %c0_i32 = arith.constant 0 : i32
    %c0_i32_0 = arith.constant 0 : i32
    %c0_i32_1 = arith.constant 0 : i32
    return %c0_i32, %c0_i32_0 : i32, i32
  }
  func.func @transform_4(%arg0: i32) -> (i32, i32) {
    %c0_i32 = arith.constant 0 : i32
    %c0_i32_0 = arith.constant 0 : i32
    %c0_i32_1 = arith.constant 0 : i32
    return %c0_i32, %c0_i32_0 : i32, i32
  }
  func.func @transform_5(%arg0: i32) -> (i32, i32, i32) {
    %c0_i32 = arith.constant 0 : i32
    %c0_i32_0 = arith.constant 0 : i32
    %c0_i32_1 = arith.constant 0 : i32
    return %arg0, %c0_i32, %c0_i32_0 : i32, i32, i32
  }
}

</mosaic_0001>

<llo_original>
// kernel: residual_block_forward.1
$region0: #{residual_block_forward.1}
  #allocation0 [shape = 'u32[]', space=smem, size = 0x4, offset = 0x4, fixed_abs, tag = 'smem constant byte address 0x4 - core index']
  #allocation1 [shape = 'u32[144,128]{1,0:T(1,128)}', space=vmem, size = 0x12000, scoped, tag = 'internal scratch']
  #allocation2 [shape = 'f32[2,10,10,32]{3,2,1,0:T(8,128)}', space=vmem, size = 0x28000, scoped, tag = 'scratch operand']
  #allocation3 [shape = 'f32[2,10,10,32]{3,2,1,0:T(8,128)}', space=vmem, size = 0x28000, scoped, tag = 'scratch operand']
  %s0 = inlined_call_operand.vmem [shape: f32[2,8,8,32], index: 0, kind: input, shape index: {}]
  %s1 = inlined_call_operand.vmem [shape: f32[288,32], index: 1, kind: input, shape index: {}]
  %s2 = inlined_call_operand.vmem [shape: f32[1,32], index: 2, kind: input, shape index: {}]
  %s3 = inlined_call_operand.vmem [shape: f32[288,32], index: 3, kind: input, shape index: {}]
  %s4 = inlined_call_operand.vmem [shape: f32[1,32], index: 4, kind: input, shape index: {}]
  %s5 = inlined_call_operand.hbm [shape: f32[2,64,32], index: 5, kind: output, shape index: {}]
  %s6 = sld [smem:[#allocation0]]
  $region30: #{residual_block_forward.1} parent=0
    _
  %s8 = ssub.s32 1, %s6
  %s9 = scalar_select 0, %s8, %s6
  $region1: #{residual_block_forward.1} parent=0
    #allocation4 [shape = 'u8[65536]{0}', space=vmem, size = 0x10000, scoped, tag = 'output window, operand 0, single buffered']
    #allocation5 [shape = 's32[1]{0}', space=sflag, size = 0x4, scoped, tag = 'scoped memory for residual_block_forward.1']
    %10 = vsyncpa [#allocation5], 0
    // Predicated region
    $region2: #{residual_block_forward.1} parent=1 // pred_check
      _
    $region3: #{residual_block_forward.1} parent=1 // pred_check_branch
      %12 = sbr.rel (0) target = $region5
    $region4: #{residual_block_forward.1} parent=1 // pred_region
      _
    $region5: #{residual_block_forward.1} parent=1 // pred_fallthru
      _
    // Predicated region
    $region6: #{residual_block_forward.1} parent=1 // pred_check
      _
    $region7: #{residual_block_forward.1} parent=1 // pred_check_branch
      %14 = sbr.rel (0) target = $region9
    $region8: #{residual_block_forward.1} parent=1 // pred_region
      _
    $region9: #{residual_block_forward.1} parent=1 // pred_fallthru
      _
    // Predicated region
    $region10: #{residual_block_forward.1} parent=1 // pred_check
      _
    $region11: #{residual_block_forward.1} parent=1 // pred_check_branch
      %16 = sbr.rel (0) target = $region13
    $region12: #{residual_block_forward.1} parent=1 // pred_region
      _
    $region13: #{residual_block_forward.1} parent=1 // pred_fallthru
      _
    // Predicated region
    $region14: #{residual_block_forward.1} parent=1 // pred_check
      _
    $region15: #{residual_block_forward.1} parent=1 // pred_check_branch
      %18 = sbr.rel (0) target = $region17
    $region16: #{residual_block_forward.1} parent=1 // pred_region
      _
    $region17: #{residual_block_forward.1} parent=1 // pred_fallthru
      _
    // Predicated region
    $region18: #{residual_block_forward.1} parent=1 // pred_check
      _
    $region19: #{residual_block_forward.1} parent=1 // pred_check_branch
      %20 = sbr.rel (0) target = $region21
    $region20: #{residual_block_forward.1} parent=1 // pred_region
      _
    $region21: #{residual_block_forward.1} parent=1 // pred_fallthru
      _
    %vm21 = vcmask 261120
    %22 = vst.msk [vmem:[#allocation2] sm:$0xff] %vm21, 0.0
    %vm23 = vcmask 254976
    %24 = vst.msk [vmem:[#allocation2 + $0x8] sm:$0x3] %vm23, 0.0
    %25 = vst.msk [vmem:[#allocation2 + $0x10] sm:$0xff] %vm21, 0.0
    %26 = vst.msk [vmem:[#allocation2 + $0x18] sm:$0x3] %vm23, 0.0
    %27 = vst.msk [vmem:[#allocation2 + $0x20] sm:$0xff] %vm21, 0.0
    %28 = vst.msk [vmem:[#allocation2 + $0x28] sm:$0x3] %vm23, 0.0
    %29 = vst.msk [vmem:[#allocation2 + $0x30] sm:$0xff] %vm21, 0.0
    %30 = vst.msk [vmem:[#allocation2 + $0x38] sm:$0x3] %vm23, 0.0
    %31 = vst.msk [vmem:[#allocation2 + $0x40] sm:$0xff] %vm21, 0.0
    %32 = vst.msk [vmem:[#allocation2 + $0x48] sm:$0x3] %vm23, 0.0
    %33 = vst.msk [vmem:[#allocation2 + $0x50] sm:$0xff] %vm21, 0.0
    %34 = vst.msk [vmem:[#allocation2 + $0x58] sm:$0x3] %vm23, 0.0
    %35 = vst.msk [vmem:[#allocation2 + $0x60] sm:$0xff] %vm21, 0.0
    %36 = vst.msk [vmem:[#allocation2 + $0x68] sm:$0x3] %vm23, 0.0
    %37 = vst.msk [vmem:[#allocation2 + $0x70] sm:$0xff] %vm21, 0.0
    %38 = vst.msk [vmem:[#allocation2 + $0x78] sm:$0x3] %vm23, 0.0
    %39 = vst.msk [vmem:[#allocation2 + $0x80] sm:$0xff] %vm21, 0.0
    %40 = vst.msk [vmem:[#allocation2 + $0x88] sm:$0x3] %vm23, 0.0
    %41 = vst.msk [vmem:[#allocation2 + $0x90] sm:$0xff] %vm21, 0.0
    %42 = vst.msk [vmem:[#allocation2 + $0x98] sm:$0x3] %vm23, 0.0
    %43 = vst.msk [vmem:[#allocation2 + $0xa0] sm:$0xff] %vm21, 0.0
    %44 = vst.msk [vmem:[#allocation2 + $0xa8] sm:$0x3] %vm23, 0.0
    %45 = vst.msk [vmem:[#allocation2 + $0xb0] sm:$0xff] %vm21, 0.0
    %46 = vst.msk [vmem:[#allocation2 + $0xb8] sm:$0x3] %vm23, 0.0
    %47 = vst.msk [vmem:[#allocation2 + $0xc0] sm:$0xff] %vm21, 0.0
    %48 = vst.msk [vmem:[#allocation2 + $0xc8] sm:$0x3] %vm23, 0.0
    %49 = vst.msk [vmem:[#allocation2 + $0xd0] sm:$0xff] %vm21, 0.0
    %50 = vst.msk [vmem:[#allocation2 + $0xd8] sm:$0x3] %vm23, 0.0
    %51 = vst.msk [vmem:[#allocation2 + $0xe0] sm:$0xff] %vm21, 0.0
    %52 = vst.msk [vmem:[#allocation2 + $0xe8] sm:$0x3] %vm23, 0.0
    %53 = vst.msk [vmem:[#allocation2 + $0xf0] sm:$0xff] %vm21, 0.0
    %54 = vst.msk [vmem:[#allocation2 + $0xf8] sm:$0x3] %vm23, 0.0
    %55 = vst.msk [vmem:[#allocation2 + $0x100] sm:$0xff] %vm21, 0.0
    %56 = vst.msk [vmem:[#allocation2 + $0x108] sm:$0x3] %vm23, 0.0
    %57 = vst.msk [vmem:[#allocation2 + $0x110] sm:$0xff] %vm21, 0.0
    %58 = vst.msk [vmem:[#allocation2 + $0x118] sm:$0x3] %vm23, 0.0
    %59 = vst.msk [vmem:[#allocation2 + $0x120] sm:$0xff] %vm21, 0.0
    %60 = vst.msk [vmem:[#allocation2 + $0x128] sm:$0x3] %vm23, 0.0
    %61 = vst.msk [vmem:[#allocation2 + $0x130] sm:$0xff] %vm21, 0.0
    %62 = vst.msk [vmem:[#allocation2 + $0x138] sm:$0x3] %vm23, 0.0
    %63 = vst.msk [vmem:[#allocation3] sm:$0xff] %vm21, 0.0
    %64 = vst.msk [vmem:[#allocation3 + $0x8] sm:$0x3] %vm23, 0.0
    %65 = vst.msk [vmem:[#allocation3 + $0x10] sm:$0xff] %vm21, 0.0
    %66 = vst.msk [vmem:[#allocation3 + $0x18] sm:$0x3] %vm23, 0.0
    %67 = vst.msk [vmem:[#allocation3 + $0x20] sm:$0xff] %vm21, 0.0
    %68 = vst.msk [vmem:[#allocation3 + $0x28] sm:$0x3] %vm23, 0.0
    %69 = vst.msk [vmem:[#allocation3 + $0x30] sm:$0xff] %vm21, 0.0
    %70 = vst.msk [vmem:[#allocation3 + $0x38] sm:$0x3] %vm23, 0.0
    %71 = vst.msk [vmem:[#allocation3 + $0x40] sm:$0xff] %vm21, 0.0
    %72 = vst.msk [vmem:[#allocation3 + $0x48] sm:$0x3] %vm23, 0.0
    %73 = vst.msk [vmem:[#allocation3 + $0x50] sm:$0xff] %vm21, 0.0
    %74 = vst.msk [vmem:[#allocation3 + $0x58] sm:$0x3] %vm23, 0.0
    %75 = vst.msk [vmem:[#allocation3 + $0x60] sm:$0xff] %vm21, 0.0
    %76 = vst.msk [vmem:[#allocation3 + $0x68] sm:$0x3] %vm23, 0.0
    %77 = vst.msk [vmem:[#allocation3 + $0x70] sm:$0xff] %vm21, 0.0
    %78 = vst.msk [vmem:[#allocation3 + $0x78] sm:$0x3] %vm23, 0.0
    %79 = vst.msk [vmem:[#allocation3 + $0x80] sm:$0xff] %vm21, 0.0
    %80 = vst.msk [vmem:[#allocation3 + $0x88] sm:$0x3] %vm23, 0.0
    %81 = vst.msk [vmem:[#allocation3 + $0x90] sm:$0xff] %vm21, 0.0
    %82 = vst.msk [vmem:[#allocation3 + $0x98] sm:$0x3] %vm23, 0.0
    %83 = vst.msk [vmem:[#allocation3 + $0xa0] sm:$0xff] %vm21, 0.0
    %84 = vst.msk [vmem:[#allocation3 + $0xa8] sm:$0x3] %vm23, 0.0
    %85 = vst.msk [vmem:[#allocation3 + $0xb0] sm:$0xff] %vm21, 0.0
    %86 = vst.msk [vmem:[#allocation3 + $0xb8] sm:$0x3] %vm23, 0.0
    %87 = vst.msk [vmem:[#allocation3 + $0xc0] sm:$0xff] %vm21, 0.0
    %88 = vst.msk [vmem:[#allocation3 + $0xc8] sm:$0x3] %vm23, 0.0
    %89 = vst.msk [vmem:[#allocation3 + $0xd0] sm:$0xff] %vm21, 0.0
    %90 = vst.msk [vmem:[#allocation3 + $0xd8] sm:$0x3] %vm23, 0.0
    %91 = vst.msk [vmem:[#allocation3 + $0xe0] sm:$0xff] %vm21, 0.0
    %92 = vst.msk [vmem:[#allocation3 + $0xe8] sm:$0x3] %vm23, 0.0
    %93 = vst.msk [vmem:[#allocation3 + $0xf0] sm:$0xff] %vm21, 0.0
    %94 = vst.msk [vmem:[#allocation3 + $0xf8] sm:$0x3] %vm23, 0.0
    %95 = vst.msk [vmem:[#allocation3 + $0x100] sm:$0xff] %vm21, 0.0
    %96 = vst.msk [vmem:[#allocation3 + $0x108] sm:$0x3] %vm23, 0.0
    %97 = vst.msk [vmem:[#allocation3 + $0x110] sm:$0xff] %vm21, 0.0
    %98 = vst.msk [vmem:[#allocation3 + $0x118] sm:$0x3] %vm23, 0.0
    %99 = vst.msk [vmem:[#allocation3 + $0x120] sm:$0xff] %vm21, 0.0
    %100 = vst.msk [vmem:[#allocation3 + $0x128] sm:$0x3] %vm23, 0.0
    %101 = vst.msk [vmem:[#allocation3 + $0x130] sm:$0xff] %vm21, 0.0
    %102 = vst.msk [vmem:[#allocation3 + $0x138] sm:$0x3] %vm23, 0.0
    %v103 = vld [vmem:[%s0] sm:$0xff]
    %v104 = vld [vmem:[%s0 + $0x8] sm:$0xff]
    %v105 = vld [vmem:[%s0 + $0x10] sm:$0xff]
    %v106 = vld [vmem:[%s0 + $0x18] sm:$0xff]
    %v107 = vld [vmem:[%s0 + $0x20] sm:$0xff]
    %v108 = vld [vmem:[%s0 + $0x28] sm:$0xff]
    %v109 = vld [vmem:[%s0 + $0x30] sm:$0xff]
    %v110 = vld [vmem:[%s0 + $0x38] sm:$0xff]
    %v111 = vld [vmem:[%s0 + $0x40] sm:$0xff]
    %v112 = vld [vmem:[%s0 + $0x48] sm:$0xff]
    %v113 = vld [vmem:[%s0 + $0x50] sm:$0xff]
    %v114 = vld [vmem:[%s0 + $0x58] sm:$0xff]
    %v115 = vld [vmem:[%s0 + $0x60] sm:$0xff]
    %v116 = vld [vmem:[%s0 + $0x68] sm:$0xff]
    %v117 = vld [vmem:[%s0 + $0x70] sm:$0xff]
    %v118 = vld [vmem:[%s0 + $0x78] sm:$0xff]
    %s119 = scalar_lea.vmem [#allocation2], 16
    %120 = vst.msk [vmem:[%s119 + $0x1] sm:$0xff] %vm21, %v103
    %121 = vst.msk [vmem:[%s119 + $0x11] sm:$0xff] %vm21, %v104
    %122 = vst.msk [vmem:[%s119 + $0x21] sm:$0xff] %vm21, %v105
    %123 = vst.msk [vmem:[%s119 + $0x31] sm:$0xff] %vm21, %v106
    %124 = vst.msk [vmem:[%s119 + $0x41] sm:$0xff] %vm21, %v107
    %125 = vst.msk [vmem:[%s119 + $0x51] sm:$0xff] %vm21, %v108
    %126 = vst.msk [vmem:[%s119 + $0x61] sm:$0xff] %vm21, %v109
    %127 = vst.msk [vmem:[%s119 + $0x71] sm:$0xff] %vm21, %v110
    %128 = vst.msk [vmem:[%s119 + $0xa1] sm:$0xff] %vm21, %v111
    %129 = vst.msk [vmem:[%s119 + $0xb1] sm:$0xff] %vm21, %v112
    %130 = vst.msk [vmem:[%s119 + $0xc1] sm:$0xff] %vm21, %v113
    %131 = vst.msk [vmem:[%s119 + $0xd1] sm:$0xff] %vm21, %v114
    %132 = vst.msk [vmem:[%s119 + $0xe1] sm:$0xff] %vm21, %v115
    %133 = vst.msk [vmem:[%s119 + $0xf1] sm:$0xff] %vm21, %v116
    %134 = vst.msk [vmem:[%s119 + $0x101] sm:$0xff] %vm21, %v117
    %135 = vst.msk [vmem:[%s119 + $0x111] sm:$0xff] %vm21, %v118
    %v136 = vld [vmem:[#allocation2] sm:$0xff]
    %v137 = vld [vmem:[#allocation2 + $0x8] sm:$0x3]
    %v138 = vld [vmem:[#allocation2 + $0x10] sm:$0xff]
    %v139 = vld [vmem:[#allocation2 + $0x18] sm:$0x3]
    %v140 = vld [vmem:[#allocation2 + $0x20] sm:$0xff]
    %v141 = vld [vmem:[#allocation2 + $0x28] sm:$0x3]
    %v142 = vld [vmem:[#allocation2 + $0x30] sm:$0xff]
    %v143 = vld [vmem:[#allocation2 + $0x38] sm:$0x3]
    %v144 = vld [vmem:[#allocation2 + $0x40] sm:$0xff]
    %v145 = vld [vmem:[#allocation2 + $0x48] sm:$0x3]
    %v146 = vld [vmem:[#allocation2 + $0x50] sm:$0xff]
    %v147 = vld [vmem:[#allocation2 + $0x58] sm:$0x3]
    %v148 = vld [vmem:[#allocation2 + $0x60] sm:$0xff]
    %v149 = vld [vmem:[#allocation2 + $0x68] sm:$0x3]
    %v150 = vld [vmem:[#allocation2 + $0x70] sm:$0xff]
    %v151 = vld [vmem:[#allocation2 + $0x78] sm:$0x3]
    %v152 = vld [vmem:[#allocation2 + $0x80] sm:$0xff]
    %v153 = vld [vmem:[#allocation2 + $0x88] sm:$0x3]
    %v154 = vld [vmem:[#allocation2 + $0x90] sm:$0xff]
    %v155 = vld [vmem:[#allocation2 + $0x98] sm:$0x3]
    %v156 = vld [vmem:[#allocation2 + $0xa0] sm:$0xff]
    %v157 = vld [vmem:[#allocation2 + $0xa8] sm:$0x3]
    %v158 = vld [vmem:[#allocation2 + $0xb0] sm:$0xff]
    %v159 = vld [vmem:[#allocation2 + $0xb8] sm:$0x3]
    %v160 = vld [vmem:[#allocation2 + $0xc0] sm:$0xff]
    %v161 = vld [vmem:[#allocation2 + $0xc8] sm:$0x3]
    %v162 = vld [vmem:[#allocation2 + $0xd0] sm:$0xff]
    %v163 = vld [vmem:[#allocation2 + $0xd8] sm:$0x3]
    %v164 = vld [vmem:[#allocation2 + $0xe0] sm:$0xff]
    %v165 = vld [vmem:[#allocation2 + $0xe8] sm:$0x3]
    %v166 = vld [vmem:[#allocation2 + $0xf0] sm:$0xff]
    %v167 = vld [vmem:[#allocation2 + $0xf8] sm:$0x3]
    %v168 = vld [vmem:[#allocation2 + $0x100] sm:$0xff]
    %v169 = vld [vmem:[#allocation2 + $0x108] sm:$0x3]
    %v170 = vld [vmem:[#allocation2 + $0x110] sm:$0xff]
    %v171 = vld [vmem:[#allocation2 + $0x118] sm:$0x3]
    %v172 = vld [vmem:[#allocation2 + $0x120] sm:$0xff]
    %v173 = vld [vmem:[#allocation2 + $0x128] sm:$0x3]
    %v174 = vld [vmem:[#allocation2 + $0x130] sm:$0xff]
    %v175 = vld [vmem:[#allocation2 + $0x138] sm:$0x3]
    %vm208 = vcmask 1046528
    %v209 = vrot.slane %v136, 1
    %v210 = vrot.slane %v137, 1
    %v211 = vsel %vm208, %v209, %v210
    %v212 = vrot.slane %v138, 1
    %v213 = vrot.slane %v139, 1
    %v214 = vsel %vm208, %v212, %v213
    %v215 = vrot.slane %v140, 1
    %v216 = vrot.slane %v141, 1
    %v217 = vsel %vm208, %v215, %v216
    %v218 = vrot.slane %v142, 1
    %v219 = vrot.slane %v143, 1
    %v220 = vsel %vm208, %v218, %v219
    %v221 = vrot.slane %v144, 1
    %v222 = vrot.slane %v145, 1
    %v223 = vsel %vm208, %v221, %v222
    %v224 = vrot.slane %v146, 1
    %v225 = vrot.slane %v147, 1
    %v226 = vsel %vm208, %v224, %v225
    %v227 = vrot.slane %v148, 1
    %v228 = vrot.slane %v149, 1
    %v229 = vsel %vm208, %v227, %v228
    %v230 = vrot.slane %v150, 1
    %v231 = vrot.slane %v151, 1
    %v232 = vsel %vm208, %v230, %v231
    %v233 = vrot.slane %v156, 1
    %v234 = vrot.slane %v157, 1
    %v235 = vsel %vm208, %v233, %v234
    %v236 = vrot.slane %v158, 1
    %v237 = vrot.slane %v159, 1
    %v238 = vsel %vm208, %v236, %v237
    %v239 = vrot.slane %v160, 1
    %v240 = vrot.slane %v161, 1
    %v241 = vsel %vm208, %v239, %v240
    %v242 = vrot.slane %v162, 1
    %v243 = vrot.slane %v163, 1
    %v244 = vsel %vm208, %v242, %v243
    %v245 = vrot.slane %v164, 1
    %v246 = vrot.slane %v165, 1
    %v247 = vsel %vm208, %v245, %v246
    %v248 = vrot.slane %v166, 1
    %v249 = vrot.slane %v167, 1
    %v250 = vsel %vm208, %v248, %v249
    %v251 = vrot.slane %v168, 1
    %v252 = vrot.slane %v169, 1
    %v253 = vsel %vm208, %v251, %v252
    %v254 = vrot.slane %v170, 1
    %v255 = vrot.slane %v171, 1
    %v256 = vsel %vm208, %v254, %v255
    %257 = vrot.lane.b32.xlu0 %v211, 32
    %v258 = vpop.permute.xlu0 %257
    %259 = vrot.lane.b32.xlu0 %v214, 32
    %v260 = vpop.permute.xlu0 %259
    %261 = vrot.lane.b32.xlu0 %v217, 32
    %v262 = vpop.permute.xlu0 %261
    %263 = vrot.lane.b32.xlu0 %v220, 32
    %v264 = vpop.permute.xlu0 %263
    %265 = vrot.lane.b32.xlu0 %v223, 32
    %v266 = vpop.permute.xlu0 %265
    %267 = vrot.lane.b32.xlu0 %v226, 32
    %v268 = vpop.permute.xlu0 %267
    %269 = vrot.lane.b32.xlu0 %v229, 32
    %v270 = vpop.permute.xlu0 %269
    %271 = vrot.lane.b32.xlu0 %v232, 32
    %v272 = vpop.permute.xlu0 %271
    %273 = vrot.lane.b32.xlu0 %v235, 32
    %v274 = vpop.permute.xlu0 %273
    %275 = vrot.lane.b32.xlu0 %v238, 32
    %v276 = vpop.permute.xlu0 %275
    %277 = vrot.lane.b32.xlu0 %v241, 32
    %v278 = vpop.permute.xlu0 %277
    %279 = vrot.lane.b32.xlu0 %v244, 32
    %v280 = vpop.permute.xlu0 %279
    %281 = vrot.lane.b32.xlu0 %v247, 32
    %v282 = vpop.permute.xlu0 %281
    %283 = vrot.lane.b32.xlu0 %v250, 32
    %v284 = vpop.permute.xlu0 %283
    %285 = vrot.lane.b32.xlu0 %v253, 32
    %v286 = vpop.permute.xlu0 %285
    %287 = vrot.lane.b32.xlu0 %v256, 32
    %v288 = vpop.permute.xlu0 %287
    %vm305 = vcmask 1045504
    %v306 = vrot.slane %v136, 2
    %v307 = vrot.slane %v137, 2
    %v308 = vsel %vm305, %v306, %v307
    %v309 = vrot.slane %v138, 2
    %v310 = vrot.slane %v139, 2
    %v311 = vsel %vm305, %v309, %v310
    %v312 = vrot.slane %v140, 2
    %v313 = vrot.slane %v141, 2
    %v314 = vsel %vm305, %v312, %v313
    %v315 = vrot.slane %v142, 2
    %v316 = vrot.slane %v143, 2
    %v317 = vsel %vm305, %v315, %v316
    %v318 = vrot.slane %v144, 2
    %v319 = vrot.slane %v145, 2
    %v320 = vsel %vm305, %v318, %v319
    %v321 = vrot.slane %v146, 2
    %v322 = vrot.slane %v147, 2
    %v323 = vsel %vm305, %v321, %v322
    %v324 = vrot.slane %v148, 2
    %v325 = vrot.slane %v149, 2
    %v326 = vsel %vm305, %v324, %v325
    %v327 = vrot.slane %v150, 2
    %v328 = vrot.slane %v151, 2
    %v329 = vsel %vm305, %v327, %v328
    %v330 = vrot.slane %v156, 2
    %v331 = vrot.slane %v157, 2
    %v332 = vsel %vm305, %v330, %v331
    %v333 = vrot.slane %v158, 2
    %v334 = vrot.slane %v159, 2
    %v335 = vsel %vm305, %v333, %v334
    %v336 = vrot.slane %v160, 2
    %v337 = vrot.slane %v161, 2
    %v338 = vsel %vm305, %v336, %v337
    %v339 = vrot.slane %v162, 2
    %v340 = vrot.slane %v163, 2
    %v341 = vsel %vm305, %v339, %v340
    %v342 = vrot.slane %v164, 2
    %v343 = vrot.slane %v165, 2
    %v344 = vsel %vm305, %v342, %v343
    %v345 = vrot.slane %v166, 2
    %v346 = vrot.slane %v167, 2
    %v347 = vsel %vm305, %v345, %v346
    %v348 = vrot.slane %v168, 2
    %v349 = vrot.slane %v169, 2
    %v350 = vsel %vm305, %v348, %v349
    %v351 = vrot.slane %v170, 2
    %v352 = vrot.slane %v171, 2
    %v353 = vsel %vm305, %v351, %v352
    %354 = vrot.lane.b32.xlu0 %v308, 64
    %v355 = vpop.permute.xlu0 %354
    %356 = vrot.lane.b32.xlu0 %v311, 64
    %v357 = vpop.permute.xlu0 %356
    %358 = vrot.lane.b32.xlu0 %v314, 64
    %v359 = vpop.permute.xlu0 %358
    %360 = vrot.lane.b32.xlu0 %v317, 64
    %v361 = vpop.permute.xlu0 %360
    %362 = vrot.lane.b32.xlu0 %v320, 64
    %v363 = vpop.permute.xlu0 %362
    %364 = vrot.lane.b32.xlu0 %v323, 64
    %v365 = vpop.permute.xlu0 %364
    %366 = vrot.lane.b32.xlu0 %v326, 64
    %v367 = vpop.permute.xlu0 %366
    %368 = vrot.lane.b32.xlu0 %v329, 64
    %v369 = vpop.permute.xlu0 %368
    %370 = vrot.lane.b32.xlu0 %v332, 64
    %v371 = vpop.permute.xlu0 %370
    %372 = vrot.lane.b32.xlu0 %v335, 64
    %v373 = vpop.permute.xlu0 %372
    %374 = vrot.lane.b32.xlu0 %v338, 64
    %v375 = vpop.permute.xlu0 %374
    %376 = vrot.lane.b32.xlu0 %v341, 64
    %v377 = vpop.permute.xlu0 %376
    %378 = vrot.lane.b32.xlu0 %v344, 64
    %v379 = vpop.permute.xlu0 %378
    %380 = vrot.lane.b32.xlu0 %v347, 64
    %v381 = vpop.permute.xlu0 %380
    %382 = vrot.lane.b32.xlu0 %v350, 64
    %v383 = vpop.permute.xlu0 %382
    %384 = vrot.lane.b32.xlu0 %v353, 64
    %v385 = vpop.permute.xlu0 %384
    %404 = vrot.lane.b32.xlu0 %v138, 96
    %v405 = vpop.permute.xlu0 %404
    %406 = vrot.lane.b32.xlu0 %v140, 96
    %v407 = vpop.permute.xlu0 %406
    %408 = vrot.lane.b32.xlu0 %v142, 96
    %v409 = vpop.permute.xlu0 %408
    %410 = vrot.lane.b32.xlu0 %v144, 96
    %v411 = vpop.permute.xlu0 %410
    %412 = vrot.lane.b32.xlu0 %v146, 96
    %v413 = vpop.permute.xlu0 %412
    %414 = vrot.lane.b32.xlu0 %v148, 96
    %v415 = vpop.permute.xlu0 %414
    %416 = vrot.lane.b32.xlu0 %v150, 96
    %v417 = vpop.permute.xlu0 %416
    %418 = vrot.lane.b32.xlu0 %v152, 96
    %v419 = vpop.permute.xlu0 %418
    %420 = vrot.lane.b32.xlu0 %v158, 96
    %v421 = vpop.permute.xlu0 %420
    %422 = vrot.lane.b32.xlu0 %v160, 96
    %v423 = vpop.permute.xlu0 %422
    %424 = vrot.lane.b32.xlu0 %v162, 96
    %v425 = vpop.permute.xlu0 %424
    %426 = vrot.lane.b32.xlu0 %v164, 96
    %v427 = vpop.permute.xlu0 %426
    %428 = vrot.lane.b32.xlu0 %v166, 96
    %v429 = vpop.permute.xlu0 %428
    %430 = vrot.lane.b32.xlu0 %v168, 96
    %v431 = vpop.permute.xlu0 %430
    %432 = vrot.lane.b32.xlu0 %v170, 96
    %v433 = vpop.permute.xlu0 %432
    %434 = vrot.lane.b32.xlu0 %v172, 96
    %v435 = vpop.permute.xlu0 %434
    %v454 = vrot.slane %v152, 1
    %v455 = vrot.slane %v153, 1
    %v456 = vsel %vm208, %v454, %v455
    %v457 = vrot.slane %v172, 1
    %v458 = vrot.slane %v173, 1
    %v459 = vsel %vm208, %v457, %v458
    %v476 = vrot.slane %v152, 2
    %v477 = vrot.slane %v153, 2
    %v478 = vsel %vm305, %v476, %v477
    %v479 = vrot.slane %v172, 2
    %v480 = vrot.slane %v173, 2
    %v481 = vsel %vm305, %v479, %v480
    %482 = vrot.lane.b32.xlu0 %v311, 32
    %v483 = vpop.permute.xlu0 %482
    %484 = vrot.lane.b32.xlu0 %v314, 32
    %v485 = vpop.permute.xlu0 %484
    %486 = vrot.lane.b32.xlu0 %v317, 32
    %v487 = vpop.permute.xlu0 %486
    %488 = vrot.lane.b32.xlu0 %v320, 32
    %v489 = vpop.permute.xlu0 %488
    %490 = vrot.lane.b32.xlu0 %v323, 32
    %v491 = vpop.permute.xlu0 %490
    %492 = vrot.lane.b32.xlu0 %v326, 32
    %v493 = vpop.permute.xlu0 %492
    %494 = vrot.lane.b32.xlu0 %v329, 32
    %v495 = vpop.permute.xlu0 %494
    %496 = vrot.lane.b32.xlu0 %v478, 32
    %v497 = vpop.permute.xlu0 %496
    %498 = vrot.lane.b32.xlu0 %v335, 32
    %v499 = vpop.permute.xlu0 %498
    %500 = vrot.lane.b32.xlu0 %v338, 32
    %v501 = vpop.permute.xlu0 %500
    %502 = vrot.lane.b32.xlu0 %v341, 32
    %v503 = vpop.permute.xlu0 %502
    %504 = vrot.lane.b32.xlu0 %v344, 32
    %v505 = vpop.permute.xlu0 %504
    %506 = vrot.lane.b32.xlu0 %v347, 32
    %v507 = vpop.permute.xlu0 %506
    %508 = vrot.lane.b32.xlu0 %v350, 32
    %v509 = vpop.permute.xlu0 %508
    %510 = vrot.lane.b32.xlu0 %v353, 32
    %v511 = vpop.permute.xlu0 %510
    %512 = vrot.lane.b32.xlu0 %v481, 32
    %v513 = vpop.permute.xlu0 %512
    %532 = vrot.lane.b32.xlu0 %v140, 64
    %v533 = vpop.permute.xlu0 %532
    %534 = vrot.lane.b32.xlu0 %v142, 64
    %v535 = vpop.permute.xlu0 %534
    %536 = vrot.lane.b32.xlu0 %v144, 64
    %v537 = vpop.permute.xlu0 %536
    %538 = vrot.lane.b32.xlu0 %v146, 64
    %v539 = vpop.permute.xlu0 %538
    %540 = vrot.lane.b32.xlu0 %v148, 64
    %v541 = vpop.permute.xlu0 %540
    %542 = vrot.lane.b32.xlu0 %v150, 64
    %v543 = vpop.permute.xlu0 %542
    %544 = vrot.lane.b32.xlu0 %v152, 64
    %v545 = vpop.permute.xlu0 %544
    %546 = vrot.lane.b32.xlu0 %v154, 64
    %v547 = vpop.permute.xlu0 %546
    %548 = vrot.lane.b32.xlu0 %v160, 64
    %v549 = vpop.permute.xlu0 %548
    %550 = vrot.lane.b32.xlu0 %v162, 64
    %v551 = vpop.permute.xlu0 %550
    %552 = vrot.lane.b32.xlu0 %v164, 64
    %v553 = vpop.permute.xlu0 %552
    %554 = vrot.lane.b32.xlu0 %v166, 64
    %v555 = vpop.permute.xlu0 %554
    %556 = vrot.lane.b32.xlu0 %v168, 64
    %v557 = vpop.permute.xlu0 %556
    %558 = vrot.lane.b32.xlu0 %v170, 64
    %v559 = vpop.permute.xlu0 %558
    %560 = vrot.lane.b32.xlu0 %v172, 64
    %v561 = vpop.permute.xlu0 %560
    %562 = vrot.lane.b32.xlu0 %v174, 64
    %v563 = vpop.permute.xlu0 %562
    %v582 = vrot.slane %v154, 1
    %v583 = vrot.slane %v155, 1
    %v584 = vsel %vm208, %v582, %v583
    %v585 = vrot.slane %v174, 1
    %v586 = vrot.slane %v175, 1
    %v587 = vsel %vm208, %v585, %v586
    %588 = vrot.lane.b32.xlu0 %v217, 96
    %v589 = vpop.permute.xlu0 %588
    %590 = vrot.lane.b32.xlu0 %v220, 96
    %v591 = vpop.permute.xlu0 %590
    %592 = vrot.lane.b32.xlu0 %v223, 96
    %v593 = vpop.permute.xlu0 %592
    %594 = vrot.lane.b32.xlu0 %v226, 96
    %v595 = vpop.permute.xlu0 %594
    %596 = vrot.lane.b32.xlu0 %v229, 96
    %v597 = vpop.permute.xlu0 %596
    %598 = vrot.lane.b32.xlu0 %v232, 96
    %v599 = vpop.permute.xlu0 %598
    %600 = vrot.lane.b32.xlu0 %v456, 96
    %v601 = vpop.permute.xlu0 %600
    %602 = vrot.lane.b32.xlu0 %v584, 96
    %v603 = vpop.permute.xlu0 %602
    %604 = vrot.lane.b32.xlu0 %v241, 96
    %v605 = vpop.permute.xlu0 %604
    %606 = vrot.lane.b32.xlu0 %v244, 96
    %v607 = vpop.permute.xlu0 %606
    %608 = vrot.lane.b32.xlu0 %v247, 96
    %v609 = vpop.permute.xlu0 %608
    %610 = vrot.lane.b32.xlu0 %v250, 96
    %v611 = vpop.permute.xlu0 %610
    %612 = vrot.lane.b32.xlu0 %v253, 96
    %v613 = vpop.permute.xlu0 %612
    %614 = vrot.lane.b32.xlu0 %v256, 96
    %v615 = vpop.permute.xlu0 %614
    %616 = vrot.lane.b32.xlu0 %v459, 96
    %v617 = vpop.permute.xlu0 %616
    %618 = vrot.lane.b32.xlu0 %v587, 96
    %v619 = vpop.permute.xlu0 %618
    %v636 = vrot.slane %v154, 2
    %v637 = vrot.slane %v155, 2
    %v638 = vsel %vm305, %v636, %v637
    %v639 = vrot.slane %v174, 2
    %v640 = vrot.slane %v175, 2
    %v641 = vsel %vm305, %v639, %v640
    %v642 = vsel %vm21, %v136, %v258
    %v643 = vsel %vm21, %v138, %v260
    %v644 = vsel %vm21, %v140, %v262
    %v645 = vsel %vm21, %v142, %v264
    %v646 = vsel %vm21, %v144, %v266
    %v647 = vsel %vm21, %v146, %v268
    %v648 = vsel %vm21, %v148, %v270
    %v649 = vsel %vm21, %v150, %v272
    %v650 = vsel %vm21, %v156, %v274
    %v651 = vsel %vm21, %v158, %v276
    %v652 = vsel %vm21, %v160, %v278
    %v653 = vsel %vm21, %v162, %v280
    %v654 = vsel %vm21, %v164, %v282
    %v655 = vsel %vm21, %v166, %v284
    %v656 = vsel %vm21, %v168, %v286
    %v657 = vsel %vm21, %v170, %v288
    %vm658 = vcmask 523264
    %v659 = vsel %vm658, %v642, %v355
    %v660 = vsel %vm658, %v643, %v357
    %v661 = vsel %vm658, %v644, %v359
    %v662 = vsel %vm658, %v645, %v361
    %v663 = vsel %vm658, %v646, %v363
    %v664 = vsel %vm658, %v647, %v365
    %v665 = vsel %vm658, %v648, %v367
    %v666 = vsel %vm658, %v649, %v369
    %v667 = vsel %vm658, %v650, %v371
    %v668 = vsel %vm658, %v651, %v373
    %v669 = vsel %vm658, %v652, %v375
    %v670 = vsel %vm658, %v653, %v377
    %v671 = vsel %vm658, %v654, %v379
    %v672 = vsel %vm658, %v655, %v381
    %v673 = vsel %vm658, %v656, %v383
    %v674 = vsel %vm658, %v657, %v385
    %vm675 = vcmask 785408
    %v676 = vsel %vm675, %v659, %v405
    %v677 = vsel %vm675, %v660, %v407
    %v678 = vsel %vm675, %v661, %v409
    %v679 = vsel %vm675, %v662, %v411
    %v680 = vsel %vm675, %v663, %v413
    %v681 = vsel %vm675, %v664, %v415
    %v682 = vsel %vm675, %v665, %v417
    %v683 = vsel %vm675, %v666, %v419
    %v684 = vsel %vm675, %v667, %v421
    %v685 = vsel %vm675, %v668, %v423
    %v686 = vsel %vm675, %v669, %v425
    %v687 = vsel %vm675, %v670, %v427
    %v688 = vsel %vm675, %v671, %v429
    %v689 = vsel %vm675, %v672, %v431
    %v690 = vsel %vm675, %v673, %v433
    %v691 = vsel %vm675, %v674, %v435
    %v692 = vsel %vm21, %v214, %v483
    %v693 = vsel %vm21, %v217, %v485
    %v694 = vsel %vm21, %v220, %v487
    %v695 = vsel %vm21, %v223, %v489
    %v696 = vsel %vm21, %v226, %v491
    %v697 = vsel %vm21, %v229, %v493
    %v698 = vsel %vm21, %v232, %v495
    %v699 = vsel %vm21, %v456, %v497
    %v700 = vsel %vm21, %v238, %v499
    %v701 = vsel %vm21, %v241, %v501
    %v702 = vsel %vm21, %v244, %v503
    %v703 = vsel %vm21, %v247, %v505
    %v704 = vsel %vm21, %v250, %v507
    %v705 = vsel %vm21, %v253, %v509
    %v706 = vsel %vm21, %v256, %v511
    %v707 = vsel %vm21, %v459, %v513
    %v708 = vsel %vm658, %v692, %v533
    %v709 = vsel %vm658, %v693, %v535
    %v710 = vsel %vm658, %v694, %v537
    %v711 = vsel %vm658, %v695, %v539
    %v712 = vsel %vm658, %v696, %v541
    %v713 = vsel %vm658, %v697, %v543
    %v714 = vsel %vm658, %v698, %v545
    %v715 = vsel %vm658, %v699, %v547
    %v716 = vsel %vm658, %v700, %v549
    %v717 = vsel %vm658, %v701, %v551
    %v718 = vsel %vm658, %v702, %v553
    %v719 = vsel %vm658, %v703, %v555
    %v720 = vsel %vm658, %v704, %v557
    %v721 = vsel %vm658, %v705, %v559
    %v722 = vsel %vm658, %v706, %v561
    %v723 = vsel %vm658, %v707, %v563
    %v724 = vsel %vm675, %v708, %v589
    %v725 = vsel %vm675, %v709, %v591
    %v726 = vsel %vm675, %v710, %v593
    %v727 = vsel %vm675, %v711, %v595
    %v728 = vsel %vm675, %v712, %v597
    %v729 = vsel %vm675, %v713, %v599
    %v730 = vsel %vm675, %v714, %v601
    %v731 = vsel %vm675, %v715, %v603
    %v732 = vsel %vm675, %v716, %v605
    %v733 = vsel %vm675, %v717, %v607
    %v734 = vsel %vm675, %v718, %v609
    %v735 = vsel %vm675, %v719, %v611
    %v736 = vsel %vm675, %v720, %v613
    %v737 = vsel %vm675, %v721, %v615
    %v738 = vsel %vm675, %v722, %v617
    %v739 = vsel %vm675, %v723, %v619
    %v740 = vld [vmem:[%s1] sm:$0xff]
    %v741 = vld [vmem:[%s1 + $0x8] sm:$0xff]
    %v742 = vld [vmem:[%s1 + $0x10] sm:$0xff]
    %v743 = vld [vmem:[%s1 + $0x18] sm:$0xff]
    %v744 = vld [vmem:[%s1 + $0x20] sm:$0xff]
    %v745 = vld [vmem:[%s1 + $0x28] sm:$0xff]
    %v746 = vld [vmem:[%s1 + $0x30] sm:$0xff]
    %v747 = vld [vmem:[%s1 + $0x38] sm:$0xff]
    %v748 = vld [vmem:[%s1 + $0x40] sm:$0xff]
    %v749 = vld [vmem:[%s1 + $0x48] sm:$0xff]
    %v750 = vld [vmem:[%s1 + $0x50] sm:$0xff]
    %v751 = vld [vmem:[%s1 + $0x58] sm:$0xff]
    %v752 = vld [vmem:[%s1 + $0x60] sm:$0xff]
    %v753 = vld [vmem:[%s1 + $0x68] sm:$0xff]
    %v754 = vld [vmem:[%s1 + $0x70] sm:$0xff]
    %v755 = vld [vmem:[%s1 + $0x78] sm:$0xff]
    %v756 = vld [vmem:[%s1 + $0x80] sm:$0xff]
    %v757 = vld [vmem:[%s1 + $0x88] sm:$0xff]
    %v758 = vld [vmem:[%s1 + $0x90] sm:$0xff]
    %v759 = vld [vmem:[%s1 + $0x98] sm:$0xff]
    %v760 = vld [vmem:[%s1 + $0xa0] sm:$0xff]
    %v761 = vld [vmem:[%s1 + $0xa8] sm:$0xff]
    %v762 = vld [vmem:[%s1 + $0xb0] sm:$0xff]
    %v763 = vld [vmem:[%s1 + $0xb8] sm:$0xff]
    %v764 = vld [vmem:[%s1 + $0xc0] sm:$0xff]
    %v765 = vld [vmem:[%s1 + $0xc8] sm:$0xff]
    %v766 = vld [vmem:[%s1 + $0xd0] sm:$0xff]
    %v767 = vld [vmem:[%s1 + $0xd8] sm:$0xff]
    %v768 = vld [vmem:[%s1 + $0xe0] sm:$0xff]
    %v769 = vld [vmem:[%s1 + $0xe8] sm:$0xff]
    %v770 = vld [vmem:[%s1 + $0xf0] sm:$0xff]
    %v771 = vld [vmem:[%s1 + $0xf8] sm:$0xff]
    %v772 = vld [vmem:[%s1 + $0x100] sm:$0xff]
    %v773 = vld [vmem:[%s1 + $0x108] sm:$0xff]
    %v774 = vld [vmem:[%s1 + $0x110] sm:$0xff]
    %v775 = vld [vmem:[%s1 + $0x118] sm:$0xff]
    %v776 = vld [vmem:[%s2] sm:$0x1]
    %v778 = vlaneseq
    %v779 = vshrl.u32 %v778, 7
    %v780 = vsub.s32 0, %v779
    %v781 = vrot.slane %v776, %v780
    %v783 = vsel %vm21, %v314, 0
    %v785 = vsel %vm21, %v317, 0
    %v787 = vsel %vm21, %v320, 0
    %v789 = vsel %vm21, %v323, 0
    %v791 = vsel %vm21, %v326, 0
    %v793 = vsel %vm21, %v329, 0
    %v795 = vsel %vm21, %v478, 0
    %v797 = vsel %vm21, %v638, 0
    %v799 = vsel %vm21, %v338, 0
    %v801 = vsel %vm21, %v341, 0
    %v803 = vsel %vm21, %v344, 0
    %v805 = vsel %vm21, %v347, 0
    %v807 = vsel %vm21, %v350, 0
    %v809 = vsel %vm21, %v353, 0
    %v811 = vsel %vm21, %v481, 0
    %v813 = vsel %vm21, %v641, 0
    %815 = vmatprep.subr.mxu0 0.0
    %816 = vmatpush1.msra.mxu0 %v740
    %817 = vmatprep.subr.mxu0 0.0
    %818 = vmatpush1.msra.mxu0 %v741
    %819 = vmatprep.subr.mxu0 0.0
    %820 = vmatpush1.msra.mxu0 %v742
    %821 = vmatprep.subr.mxu0 0.0
    %822 = vmatpush1.msra.mxu0 %v743
    %823 = vmatprep.subr.mxu0 0.0
    %824 = vmatpush1.msra.mxu0 %v744
    %825 = vmatprep.subr.mxu0 0.0
    %826 = vmatpush1.msra.mxu0 %v745
    %827 = vmatprep.subr.mxu0 0.0
    %828 = vmatpush1.msra.mxu0 %v746
    %829 = vmatprep.subr.mxu0 0.0
    %830 = vmatpush1.msra.mxu0 %v747
    %831 = vmatprep.subr.mxu0 0.0
    %832 = vmatpush1.msra.mxu0 %v748
    %833 = vmatprep.subr.mxu0 0.0
    %834 = vmatpush1.msra.mxu0 %v749
    %835 = vmatprep.subr.mxu0 0.0
    %836 = vmatpush1.msra.mxu0 %v750
    %837 = vmatprep.subr.mxu0 0.0
    %838 = vmatpush1.msra.mxu0 %v751
    %839 = vmatprep.subr.mxu0 0.0
    %840 = vmatpush1.msra.mxu0 %v752
    %841 = vmatprep.subr.mxu0 0.0
    %842 = vmatpush1.msra.mxu0 %v753
    %843 = vmatprep.subr.mxu0 0.0
    %844 = vmatpush1.msra.mxu0 %v754
    %845 = vmatprep.subr.mxu0 0.0
    %846 = vmatpush1.msra.mxu0 %v755
    %847 = vmatprep.subr.mxu0 0.0
    %848 = vmatpush1.msra.mxu0 %v756
    %849 = vmatprep.subr.mxu0 0.0
    %850 = vmatpush1.msra.mxu0 %v757
    %851 = vmatprep.subr.mxu0 0.0
    %852 = vmatpush1.msra.mxu0 %v758
    %853 = vmatprep.subr.mxu0 0.0
    %854 = vmatpush1.msra.mxu0 %v759
    %855 = vmatprep.subr.mxu0 0.0
    %856 = vmatpush1.msra.mxu0 %v760
    %857 = vmatprep.subr.mxu0 0.0
    %858 = vmatpush1.msra.mxu0 %v761
    %859 = vmatprep.subr.mxu0 0.0
    %860 = vmatpush1.msra.mxu0 %v762
    %861 = vmatprep.subr.mxu0 0.0
    %862 = vmatpush1.msra.mxu0 %v763
    %863 = vmatprep.subr.mxu0 0.0
    %864 = vmatpush1.msra.mxu0 %v764
    %865 = vmatprep.subr.mxu0 0.0
    %866 = vmatpush1.msra.mxu0 %v765
    %867 = vmatprep.subr.mxu0 0.0
    %868 = vmatpush1.msra.mxu0 %v766
    %869 = vmatprep.subr.mxu0 0.0
    %870 = vmatpush1.msra.mxu0 %v767
    %871 = vmatprep.subr.mxu0 0.0
    %872 = vmatpush1.msra.mxu0 %v768
    %873 = vmatprep.subr.mxu0 0.0
    %874 = vmatpush1.msra.mxu0 %v769
    %875 = vmatprep.subr.mxu0 0.0
    %876 = vmatpush1.msra.mxu0 %v770
    %877 = vmatprep.subr.mxu0 0.0
    %878 = vmatpush1.msra.mxu0 %v771
    %879 = vmatprep.mubr.f32.mxu0 %v724
    %880 = vmatmul.mubr.f32.gmra.mrb[0].mxu0 %v676
    %v881 = vpop.f32.mrb[0].mxu0
    %v882 = vadd.f32 %v781, %v881
    %v883 = vpop.f32.mrb[0].mxu0
    %884 = vmatprep.mubr.f32.mxu0 %v725
    %885 = vmatmul.mubr.f32.gmra.mrb[0].mxu0 %v677
    %v886 = vpop.f32.mrb[0].mxu0
    %v887 = vadd.f32 %v781, %v886
    %v888 = vpop.f32.mrb[0].mxu0
    %889 = vmatprep.mubr.f32.mxu0 %v726
    %890 = vmatmul.mubr.f32.gmra.mrb[0].mxu0 %v678
    %v891 = vpop.f32.mrb[0].mxu0
    %v892 = vadd.f32 %v781, %v891
    %v893 = vpop.f32.mrb[0].mxu0
    %894 = vmatprep.mubr.f32.mxu0 %v727
    %895 = vmatmul.mubr.f32.gmra.mrb[0].mxu0 %v679
    %v896 = vpop.f32.mrb[0].mxu0
    %v897 = vadd.f32 %v781, %v896
    %v898 = vpop.f32.mrb[0].mxu0
    %899 = vmatprep.mubr.f32.mxu0 %v728
    %900 = vmatmul.mubr.f32.gmra.mrb[0].mxu0 %v680
    %v901 = vpop.f32.mrb[0].mxu0
    %v902 = vadd.f32 %v781, %v901
    %v903 = vpop.f32.mrb[0].mxu0
    %904 = vmatprep.mubr.f32.mxu0 %v729
    %905 = vmatmul.mubr.f32.gmra.mrb[0].mxu0 %v681
    %v906 = vpop.f32.mrb[0].mxu0
    %v907 = vadd.f32 %v781, %v906
    %v908 = vpop.f32.mrb[0].mxu0
    %909 = vmatprep.mubr.f32.mxu0 %v730
    %910 = vmatmul.mubr.f32.gmra.mrb[0].mxu0 %v682
    %v911 = vpop.f32.mrb[0].mxu0
    %v912 = vadd.f32 %v781, %v911
    %v913 = vpop.f32.mrb[0].mxu0
    %914 = vmatprep.mubr.f32.mxu0 %v731
    %915 = vmatmul.mubr.f32.gmra.mrb[0].mxu0 %v683
    %v916 = vpop.f32.mrb[0].mxu0
    %v917 = vadd.f32 %v781, %v916
    %v918 = vpop.f32.mrb[0].mxu0
    %919 = vmatprep.mubr.f32.mxu0 %v732
    %920 = vmatmul.mubr.f32.gmra.mrb[0].mxu0 %v684
    %v921 = vpop.f32.mrb[0].mxu0
    %v922 = vadd.f32 %v781, %v921
    %v923 = vpop.f32.mrb[0].mxu0
    %924 = vmatprep.mubr.f32.mxu0 %v733
    %925 = vmatmul.mubr.f32.gmra.mrb[0].mxu0 %v685
    %v926 = vpop.f32.mrb[0].mxu0
    %v927 = vadd.f32 %v781, %v926
    %v928 = vpop.f32.mrb[0].mxu0
    %929 = vmatprep.mubr.f32.mxu0 %v734
    %930 = vmatmul.mubr.f32.gmra.mrb[0].mxu0 %v686
    %v931 = vpop.f32.mrb[0].mxu0
    %v932 = vadd.f32 %v781, %v931
    %v933 = vpop.f32.mrb[0].mxu0
    %934 = vmatprep.mubr.f32.mxu0 %v735
    %935 = vmatmul.mubr.f32.gmra.mrb[0].mxu0 %v687
    %v936 = vpop.f32.mrb[0].mxu0
    %v937 = vadd.f32 %v781, %v936
    %v938 = vpop.f32.mrb[0].mxu0
    %939 = vmatprep.mubr.f32.mxu0 %v736
    %940 = vmatmul.mubr.f32.gmra.mrb[0].mxu0 %v688
    %v941 = vpop.f32.mrb[0].mxu0
    %v942 = vadd.f32 %v781, %v941
    %v943 = vpop.f32.mrb[0].mxu0
    %944 = vmatprep.mubr.f32.mxu0 %v737
    %945 = vmatmul.mubr.f32.gmra.mrb[0].mxu0 %v689
    %v946 = vpop.f32.mrb[0].mxu0
    %v947 = vadd.f32 %v781, %v946
    %v948 = vpop.f32.mrb[0].mxu0
    %949 = vmatprep.mubr.f32.mxu0 %v738
    %950 = vmatmul.mubr.f32.gmra.mrb[0].mxu0 %v690
    %v951 = vpop.f32.mrb[0].mxu0
    %v952 = vadd.f32 %v781, %v951
    %v953 = vpop.f32.mrb[0].mxu0
    %954 = vmatprep.mubr.f32.mxu0 %v739
    %955 = vmatmul.mubr.f32.gmra.mrb[0].mxu0 %v691
    %v956 = vpop.f32.mrb[0].mxu0
    %v957 = vadd.f32 %v781, %v956
    %v958 = vpop.f32.mrb[0].mxu0
    %959 = vdwg.mxu0
    %960 = vmatprep.subr.mxu0 0.0
    %961 = vmatpush1.msra.mxu0 %v772
    %962 = vmatprep.subr.mxu0 0.0
    %963 = vmatpush1.msra.mxu0 %v773
    %964 = vmatprep.subr.mxu0 0.0
    %965 = vmatpush1.msra.mxu0 %v774
    %966 = vmatprep.subr.mxu0 0.0
    %967 = vmatpush1.msra.mxu0 %v775
    %968 = vmatprep.subr.mxu0 0.0
    %969 = vmatpush1.msra.mxu0 0.0
    %970 = vmatprep.subr.mxu0 0.0
    %971 = vmatpush1.msra.mxu0 0.0
    %972 = vmatprep.subr.mxu0 0.0
    %973 = vmatpush1.msra.mxu0 0.0
    %974 = vmatprep.subr.mxu0 0.0
    %975 = vmatpush1.msra.mxu0 0.0
    %976 = vmatprep.subr.mxu0 0.0
    %977 = vmatpush1.msra.mxu0 0.0
    %978 = vmatprep.subr.mxu0 0.0
    %979 = vmatpush1.msra.mxu0 0.0
    %980 = vmatprep.subr.mxu0 0.0
    %981 = vmatpush1.msra.mxu0 0.0
    %982 = vmatprep.subr.mxu0 0.0
    %983 = vmatpush1.msra.mxu0 0.0
    %984 = vmatprep.subr.mxu0 0.0
    %985 = vmatpush1.msra.mxu0 0.0
    %986 = vmatprep.subr.mxu0 0.0
    %987 = vmatpush1.msra.mxu0 0.0
    %988 = vmatprep.subr.mxu0 0.0
    %989 = vmatpush1.msra.mxu0 0.0
    %990 = vmatprep.subr.mxu0 0.0
    %991 = vmatpush1.msra.mxu0 0.0
    %992 = vmatprep.subr.mxu0 0.0
    %993 = vmatpush1.msra.mxu0 0.0
    %994 = vmatprep.subr.mxu0 0.0
    %995 = vmatpush1.msra.mxu0 0.0
    %996 = vmatprep.subr.mxu0 0.0
    %997 = vmatpush1.msra.mxu0 0.0
    %998 = vmatprep.subr.mxu0 0.0
    %999 = vmatpush1.msra.mxu0 0.0
    %1000 = vmatprep.subr.mxu0 0.0
    %1001 = vmatpush1.msra.mxu0 0.0
    %1002 = vmatprep.subr.mxu0 0.0
    %1003 = vmatpush1.msra.mxu0 0.0
    %1004 = vmatprep.subr.mxu0 0.0
    %1005 = vmatpush1.msra.mxu0 0.0
    %1006 = vmatprep.subr.mxu0 0.0
    %1007 = vmatpush1.msra.mxu0 0.0
    %1008 = vmatprep.subr.mxu0 0.0
    %1009 = vmatpush1.msra.mxu0 0.0
    %1010 = vmatprep.subr.mxu0 0.0
    %1011 = vmatpush1.msra.mxu0 0.0
    %1012 = vmatprep.subr.mxu0 0.0
    %1013 = vmatpush1.msra.mxu0 0.0
    %1014 = vmatprep.subr.mxu0 0.0
    %1015 = vmatpush1.msra.mxu0 0.0
    %1016 = vmatprep.subr.mxu0 0.0
    %1017 = vmatpush1.msra.mxu0 0.0
    %1018 = vmatprep.subr.mxu0 0.0
    %1019 = vmatpush1.msra.mxu0 0.0
    %1020 = vmatprep.subr.mxu0 0.0
    %1021 = vmatpush1.msra.mxu0 0.0
    %1022 = vmatprep.subr.mxu0 0.0
    %1023 = vmatpush1.msra.mxu0 0.0
    %1024 = vmatprep.mubr.f32.mxu0 0.0
    %1025 = vmatmul.mubr.f32.gmra.mrb[0].mxu0 %v783
    %v1026 = vpop.f32.mrb[0].mxu0
    %v1027 = vadd.f32 %v882, %v1026
    %v1028 = vpop.f32.mrb[0].mxu0
    %1029 = vmatprep.mubr.f32.mxu0 0.0
    %1030 = vmatmul.mubr.f32.gmra.mrb[0].mxu0 %v785
    %v1031 = vpop.f32.mrb[0].mxu0
    %v1032 = vadd.f32 %v887, %v1031
    %v1033 = vpop.f32.mrb[0].mxu0
    %1034 = vmatprep.mubr.f32.mxu0 0.0
    %1035 = vmatmul.mubr.f32.gmra.mrb[0].mxu0 %v787
    %v1036 = vpop.f32.mrb[0].mxu0
    %v1037 = vadd.f32 %v892, %v1036
    %v1038 = vpop.f32.mrb[0].mxu0
    %1039 = vmatprep.mubr.f32.mxu0 0.0
    %1040 = vmatmul.mubr.f32.gmra.mrb[0].mxu0 %v789
    %v1041 = vpop.f32.mrb[0].mxu0
    %v1042 = vadd.f32 %v897, %v1041
    %v1043 = vpop.f32.mrb[0].mxu0
    %1044 = vmatprep.mubr.f32.mxu0 0.0
    %1045 = vmatmul.mubr.f32.gmra.mrb[0].mxu0 %v791
    %v1046 = vpop.f32.mrb[0].mxu0
    %v1047 = vadd.f32 %v902, %v1046
    %v1048 = vpop.f32.mrb[0].mxu0
    %1049 = vmatprep.mubr.f32.mxu0 0.0
    %1050 = vmatmul.mubr.f32.gmra.mrb[0].mxu0 %v793
    %v1051 = vpop.f32.mrb[0].mxu0
    %v1052 = vadd.f32 %v907, %v1051
    %v1053 = vpop.f32.mrb[0].mxu0
    %1054 = vmatprep.mubr.f32.mxu0 0.0
    %1055 = vmatmul.mubr.f32.gmra.mrb[0].mxu0 %v795
    %v1056 = vpop.f32.mrb[0].mxu0
    %v1057 = vadd.f32 %v912, %v1056
    %v1058 = vpop.f32.mrb[0].mxu0
    %1059 = vmatprep.mubr.f32.mxu0 0.0
    %1060 = vmatmul.mubr.f32.gmra.mrb[0].mxu0 %v797
    %v1061 = vpop.f32.mrb[0].mxu0
    %v1062 = vadd.f32 %v917, %v1061
    %v1063 = vpop.f32.mrb[0].mxu0
    %1064 = vmatprep.mubr.f32.mxu0 0.0
    %1065 = vmatmul.mubr.f32.gmra.mrb[0].mxu0 %v799
    %v1066 = vpop.f32.mrb[0].mxu0
    %v1067 = vadd.f32 %v922, %v1066
    %v1068 = vpop.f32.mrb[0].mxu0
    %1069 = vmatprep.mubr.f32.mxu0 0.0
    %1070 = vmatmul.mubr.f32.gmra.mrb[0].mxu0 %v801
    %v1071 = vpop.f32.mrb[0].mxu0
    %v1072 = vadd.f32 %v927, %v1071
    %v1073 = vpop.f32.mrb[0].mxu0
    %1074 = vmatprep.mubr.f32.mxu0 0.0
    %1075 = vmatmul.mubr.f32.gmra.mrb[0].mxu0 %v803
    %v1076 = vpop.f32.mrb[0].mxu0
    %v1077 = vadd.f32 %v932, %v1076
    %v1078 = vpop.f32.mrb[0].mxu0
    %1079 = vmatprep.mubr.f32.mxu0 0.0
    %1080 = vmatmul.mubr.f32.gmra.mrb[0].mxu0 %v805
    %v1081 = vpop.f32.mrb[0].mxu0
    %v1082 = vadd.f32 %v937, %v1081
    %v1083 = vpop.f32.mrb[0].mxu0
    %1084 = vmatprep.mubr.f32.mxu0 0.0
    %1085 = vmatmul.mubr.f32.gmra.mrb[0].mxu0 %v807
    %v1086 = vpop.f32.mrb[0].mxu0
    %v1087 = vadd.f32 %v942, %v1086
    %v1088 = vpop.f32.mrb[0].mxu0
    %1089 = vmatprep.mubr.f32.mxu0 0.0
    %1090 = vmatmul.mubr.f32.gmra.mrb[0].mxu0 %v809
    %v1091 = vpop.f32.mrb[0].mxu0
    %v1092 = vadd.f32 %v947, %v1091
    %v1093 = vpop.f32.mrb[0].mxu0
    %1094 = vmatprep.mubr.f32.mxu0 0.0
    %1095 = vmatmul.mubr.f32.gmra.mrb[0].mxu0 %v811
    %v1096 = vpop.f32.mrb[0].mxu0
    %v1097 = vadd.f32 %v952, %v1096
    %v1098 = vpop.f32.mrb[0].mxu0
    %1099 = vmatprep.mubr.f32.mxu0 0.0
    %1100 = vmatmul.mubr.f32.gmra.mrb[0].mxu0 %v813
    %v1101 = vpop.f32.mrb[0].mxu0
    %v1102 = vadd.f32 %v957, %v1101
    %v1103 = vpop.f32.mrb[0].mxu0
    %1104 = vdwg.mxu0
    %v1105 = vmax.f32 %v1027, 0.0
    %v1106 = vmax.f32 %v1032, 0.0
    %v1107 = vmax.f32 %v1037, 0.0
    %v1108 = vmax.f32 %v1042, 0.0
    %v1109 = vmax.f32 %v1047, 0.0
    %v1110 = vmax.f32 %v1052, 0.0
    %v1111 = vmax.f32 %v1057, 0.0
    %v1112 = vmax.f32 %v1062, 0.0
    %v1113 = vmax.f32 %v1067, 0.0
    %v1114 = vmax.f32 %v1072, 0.0
    %v1115 = vmax.f32 %v1077, 0.0
    %v1116 = vmax.f32 %v1082, 0.0
    %v1117 = vmax.f32 %v1087, 0.0
    %v1118 = vmax.f32 %v1092, 0.0
    %v1119 = vmax.f32 %v1097, 0.0
    %v1120 = vmax.f32 %v1102, 0.0
    %s1121 = scalar_lea.vmem [#allocation3], 16
    %1122 = vst.msk [vmem:[%s1121 + $0x1] sm:$0xff] %vm21, %v1105
    %1123 = vst.msk [vmem:[%s1121 + $0x11] sm:$0xff] %vm21, %v1106
    %1124 = vst.msk [vmem:[%s1121 + $0x21] sm:$0xff] %vm21, %v1107
    %1125 = vst.msk [vmem:[%s1121 + $0x31] sm:$0xff] %vm21, %v1108
    %1126 = vst.msk [vmem:[%s1121 + $0x41] sm:$0xff] %vm21, %v1109
    %1127 = vst.msk [vmem:[%s1121 + $0x51] sm:$0xff] %vm21, %v1110
    %1128 = vst.msk [vmem:[%s1121 + $0x61] sm:$0xff] %vm21, %v1111
    %1129 = vst.msk [vmem:[%s1121 + $0x71] sm:$0xff] %vm21, %v1112
    %1130 = vst.msk [vmem:[%s1121 + $0xa1] sm:$0xff] %vm21, %v1113
    %1131 = vst.msk [vmem:[%s1121 + $0xb1] sm:$0xff] %vm21, %v1114
    %1132 = vst.msk [vmem:[%s1121 + $0xc1] sm:$0xff] %vm21, %v1115
    %1133 = vst.msk [vmem:[%s1121 + $0xd1] sm:$0xff] %vm21, %v1116
    %1134 = vst.msk [vmem:[%s1121 + $0xe1] sm:$0xff] %vm21, %v1117
    %1135 = vst.msk [vmem:[%s1121 + $0xf1] sm:$0xff] %vm21, %v1118
    %1136 = vst.msk [vmem:[%s1121 + $0x101] sm:$0xff] %vm21, %v1119
    %1137 = vst.msk [vmem:[%s1121 + $0x111] sm:$0xff] %vm21, %v1120
    %v1138 = vld [vmem:[#allocation3] sm:$0xff]
    %v1139 = vld [vmem:[#allocation3 + $0x8] sm:$0x3]
    %v1140 = vld [vmem:[#allocation3 + $0x10] sm:$0xff]
    %v1141 = vld [vmem:[#allocation3 + $0x18] sm:$0x3]
    %v1142 = vld [vmem:[#allocation3 + $0x20] sm:$0xff]
    %v1143 = vld [vmem:[#allocation3 + $0x28] sm:$0x3]
    %v1144 = vld [vmem:[#allocation3 + $0x30] sm:$0xff]
    %v1145 = vld [vmem:[#allocation3 + $0x38] sm:$0x3]
    %v1146 = vld [vmem:[#allocation3 + $0x40] sm:$0xff]
    %v1147 = vld [vmem:[#allocation3 + $0x48] sm:$0x3]
    %v1148 = vld [vmem:[#allocation3 + $0x50] sm:$0xff]
    %v1149 = vld [vmem:[#allocation3 + $0x58] sm:$0x3]
    %v1150 = vld [vmem:[#allocation3 + $0x60] sm:$0xff]
    %v1151 = vld [vmem:[#allocation3 + $0x68] sm:$0x3]
    %v1152 = vld [vmem:[#allocation3 + $0x70] sm:$0xff]
    %v1153 = vld [vmem:[#allocation3 + $0x78] sm:$0x3]
    %v1154 = vld [vmem:[#allocation3 + $0x80] sm:$0xff]
    %v1155 = vld [vmem:[#allocation3 + $0x88] sm:$0x3]
    %v1156 = vld [vmem:[#allocation3 + $0x90] sm:$0xff]
    %v1157 = vld [vmem:[#allocation3 + $0x98] sm:$0x3]
    %v1158 = vld [vmem:[#allocation3 + $0xa0] sm:$0xff]
    %v1159 = vld [vmem:[#allocation3 + $0xa8] sm:$0x3]
    %v1160 = vld [vmem:[#allocation3 + $0xb0] sm:$0xff]
    %v1161 = vld [vmem:[#allocation3 + $0xb8] sm:$0x3]
    %v1162 = vld [vmem:[#allocation3 + $0xc0] sm:$0xff]
    %v1163 = vld [vmem:[#allocation3 + $0xc8] sm:$0x3]
    %v1164 = vld [vmem:[#allocation3 + $0xd0] sm:$0xff]
    %v1165 = vld [vmem:[#allocation3 + $0xd8] sm:$0x3]
    %v1166 = vld [vmem:[#allocation3 + $0xe0] sm:$0xff]
    %v1167 = vld [vmem:[#allocation3 + $0xe8] sm:$0x3]
    %v1168 = vld [vmem:[#allocation3 + $0xf0] sm:$0xff]
    %v1169 = vld [vmem:[#allocation3 + $0xf8] sm:$0x3]
    %v1170 = vld [vmem:[#allocation3 + $0x100] sm:$0xff]
    %v1171 = vld [vmem:[#allocation3 + $0x108] sm:$0x3]
    %v1172 = vld [vmem:[#allocation3 + $0x110] sm:$0xff]
    %v1173 = vld [vmem:[#allocation3 + $0x118] sm:$0x3]
    %v1174 = vld [vmem:[#allocation3 + $0x120] sm:$0xff]
    %v1175 = vld [vmem:[#allocation3 + $0x128] sm:$0x3]
    %v1176 = vld [vmem:[#allocation3 + $0x130] sm:$0xff]
    %v1177 = vld [vmem:[#allocation3 + $0x138] sm:$0x3]
    %v1210 = vrot.slane %v1138, 1
    %v1211 = vrot.slane %v1139, 1
    %v1212 = vsel %vm208, %v1210, %v1211
    %v1213 = vrot.slane %v1140, 1
    %v1214 = vrot.slane %v1141, 1
    %v1215 = vsel %vm208, %v1213, %v1214
    %v1216 = vrot.slane %v1142, 1
    %v1217 = vrot.slane %v1143, 1
    %v1218 = vsel %vm208, %v1216, %v1217
    %v1219 = vrot.slane %v1144, 1
    %v1220 = vrot.slane %v1145, 1
    %v1221 = vsel %vm208, %v1219, %v1220
    %v1222 = vrot.slane %v1146, 1
    %v1223 = vrot.slane %v1147, 1
    %v1224 = vsel %vm208, %v1222, %v1223
    %v1225 = vrot.slane %v1148, 1
    %v1226 = vrot.slane %v1149, 1
    %v1227 = vsel %vm208, %v1225, %v1226
    %v1228 = vrot.slane %v1150, 1
    %v1229 = vrot.slane %v1151, 1
    %v1230 = vsel %vm208, %v1228, %v1229
    %v1231 = vrot.slane %v1152, 1
    %v1232 = vrot.slane %v1153, 1
    %v1233 = vsel %vm208, %v1231, %v1232
    %v1234 = vrot.slane %v1158, 1
    %v1235 = vrot.slane %v1159, 1
    %v1236 = vsel %vm208, %v1234, %v1235
    %v1237 = vrot.slane %v1160, 1
    %v1238 = vrot.slane %v1161, 1
    %v1239 = vsel %vm208, %v1237, %v1238
    %v1240 = vrot.slane %v1162, 1
    %v1241 = vrot.slane %v1163, 1
    %v1242 = vsel %vm208, %v1240, %v1241
    %v1243 = vrot.slane %v1164, 1
    %v1244 = vrot.slane %v1165, 1
    %v1245 = vsel %vm208, %v1243, %v1244
    %v1246 = vrot.slane %v1166, 1
    %v1247 = vrot.slane %v1167, 1
    %v1248 = vsel %vm208, %v1246, %v1247
    %v1249 = vrot.slane %v1168, 1
    %v1250 = vrot.slane %v1169, 1
    %v1251 = vsel %vm208, %v1249, %v1250
    %v1252 = vrot.slane %v1170, 1
    %v1253 = vrot.slane %v1171, 1
    %v1254 = vsel %vm208, %v1252, %v1253
    %v1255 = vrot.slane %v1172, 1
    %v1256 = vrot.slane %v1173, 1
    %v1257 = vsel %vm208, %v1255, %v1256
    %1258 = vrot.lane.b32.xlu0 %v1212, 32
    %v1259 = vpop.permute.xlu0 %1258
    %1260 = vrot.lane.b32.xlu0 %v1215, 32
    %v1261 = vpop.permute.xlu0 %1260
    %1262 = vrot.lane.b32.xlu0 %v1218, 32
    %v1263 = vpop.permute.xlu0 %1262
    %1264 = vrot.lane.b32.xlu0 %v1221, 32
    %v1265 = vpop.permute.xlu0 %1264
    %1266 = vrot.lane.b32.xlu0 %v1224, 32
    %v1267 = vpop.permute.xlu0 %1266
    %1268 = vrot.lane.b32.xlu0 %v1227, 32
    %v1269 = vpop.permute.xlu0 %1268
    %1270 = vrot.lane.b32.xlu0 %v1230, 32
    %v1271 = vpop.permute.xlu0 %1270
    %1272 = vrot.lane.b32.xlu0 %v1233, 32
    %v1273 = vpop.permute.xlu0 %1272
    %1274 = vrot.lane.b32.xlu0 %v1236, 32
    %v1275 = vpop.permute.xlu0 %1274
    %1276 = vrot.lane.b32.xlu0 %v1239, 32
    %v1277 = vpop.permute.xlu0 %1276
    %1278 = vrot.lane.b32.xlu0 %v1242, 32
    %v1279 = vpop.permute.xlu0 %1278
    %1280 = vrot.lane.b32.xlu0 %v1245, 32
    %v1281 = vpop.permute.xlu0 %1280
    %1282 = vrot.lane.b32.xlu0 %v1248, 32
    %v1283 = vpop.permute.xlu0 %1282
    %1284 = vrot.lane.b32.xlu0 %v1251, 32
    %v1285 = vpop.permute.xlu0 %1284
    %1286 = vrot.lane.b32.xlu0 %v1254, 32
    %v1287 = vpop.permute.xlu0 %1286
    %1288 = vrot.lane.b32.xlu0 %v1257, 32
    %v1289 = vpop.permute.xlu0 %1288
    %v1306 = vrot.slane %v1138, 2
    %v1307 = vrot.slane %v1139, 2
    %v1308 = vsel %vm305, %v1306, %v1307
    %v1309 = vrot.slane %v1140, 2
    %v1310 = vrot.slane %v1141, 2
    %v1311 = vsel %vm305, %v1309, %v1310
    %v1312 = vrot.slane %v1142, 2
    %v1313 = vrot.slane %v1143, 2
    %v1314 = vsel %vm305, %v1312, %v1313
    %v1315 = vrot.slane %v1144, 2
    %v1316 = vrot.slane %v1145, 2
    %v1317 = vsel %vm305, %v1315, %v1316
    %v1318 = vrot.slane %v1146, 2
    %v1319 = vrot.slane %v1147, 2
    %v1320 = vsel %vm305, %v1318, %v1319
    %v1321 = vrot.slane %v1148, 2
    %v1322 = vrot.slane %v1149, 2
    %v1323 = vsel %vm305, %v1321, %v1322
    %v1324 = vrot.slane %v1150, 2
    %v1325 = vrot.slane %v1151, 2
    %v1326 = vsel %vm305, %v1324, %v1325
    %v1327 = vrot.slane %v1152, 2
    %v1328 = vrot.slane %v1153, 2
    %v1329 = vsel %vm305, %v1327, %v1328
    %v1330 = vrot.slane %v1158, 2
    %v1331 = vrot.slane %v1159, 2
    %v1332 = vsel %vm305, %v1330, %v1331
    %v1333 = vrot.slane %v1160, 2
    %v1334 = vrot.slane %v1161, 2
    %v1335 = vsel %vm305, %v1333, %v1334
    %v1336 = vrot.slane %v1162, 2
    %v1337 = vrot.slane %v1163, 2
    %v1338 = vsel %vm305, %v1336, %v1337
    %v1339 = vrot.slane %v1164, 2
    %v1340 = vrot.slane %v1165, 2
    %v1341 = vsel %vm305, %v1339, %v1340
    %v1342 = vrot.slane %v1166, 2
    %v1343 = vrot.slane %v1167, 2
    %v1344 = vsel %vm305, %v1342, %v1343
    %v1345 = vrot.slane %v1168, 2
    %v1346 = vrot.slane %v1169, 2
    %v1347 = vsel %vm305, %v1345, %v1346
    %v1348 = vrot.slane %v1170, 2
    %v1349 = vrot.slane %v1171, 2
    %v1350 = vsel %vm305, %v1348, %v1349
    %v1351 = vrot.slane %v1172, 2
    %v1352 = vrot.slane %v1173, 2
    %v1353 = vsel %vm305, %v1351, %v1352
    %1354 = vrot.lane.b32.xlu0 %v1308, 64
    %v1355 = vpop.permute.xlu0 %1354
    %1356 = vrot.lane.b32.xlu0 %v1311, 64
    %v1357 = vpop.permute.xlu0 %1356
    %1358 = vrot.lane.b32.xlu0 %v1314, 64
    %v1359 = vpop.permute.xlu0 %1358
    %1360 = vrot.lane.b32.xlu0 %v1317, 64
    %v1361 = vpop.permute.xlu0 %1360
    %1362 = vrot.lane.b32.xlu0 %v1320, 64
    %v1363 = vpop.permute.xlu0 %1362
    %1364 = vrot.lane.b32.xlu0 %v1323, 64
    %v1365 = vpop.permute.xlu0 %1364
    %1366 = vrot.lane.b32.xlu0 %v1326, 64
    %v1367 = vpop.permute.xlu0 %1366
    %1368 = vrot.lane.b32.xlu0 %v1329, 64
    %v1369 = vpop.permute.xlu0 %1368
    %1370 = vrot.lane.b32.xlu0 %v1332, 64
    %v1371 = vpop.permute.xlu0 %1370
    %1372 = vrot.lane.b32.xlu0 %v1335, 64
    %v1373 = vpop.permute.xlu0 %1372
    %1374 = vrot.lane.b32.xlu0 %v1338, 64
    %v1375 = vpop.permute.xlu0 %1374
    %1376 = vrot.lane.b32.xlu0 %v1341, 64
    %v1377 = vpop.permute.xlu0 %1376
    %1378 = vrot.lane.b32.xlu0 %v1344, 64
    %v1379 = vpop.permute.xlu0 %1378
    %1380 = vrot.lane.b32.xlu0 %v1347, 64
    %v1381 = vpop.permute.xlu0 %1380
    %1382 = vrot.lane.b32.xlu0 %v1350, 64
    %v1383 = vpop.permute.xlu0 %1382
    %1384 = vrot.lane.b32.xlu0 %v1353, 64
    %v1385 = vpop.permute.xlu0 %1384
    %1404 = vrot.lane.b32.xlu0 %v1140, 96
    %v1405 = vpop.permute.xlu0 %1404
    %1406 = vrot.lane.b32.xlu0 %v1142, 96
    %v1407 = vpop.permute.xlu0 %1406
    %1408 = vrot.lane.b32.xlu0 %v1144, 96
    %v1409 = vpop.permute.xlu0 %1408
    %1410 = vrot.lane.b32.xlu0 %v1146, 96
    %v1411 = vpop.permute.xlu0 %1410
    %1412 = vrot.lane.b32.xlu0 %v1148, 96
    %v1413 = vpop.permute.xlu0 %1412
    %1414 = vrot.lane.b32.xlu0 %v1150, 96
    %v1415 = vpop.permute.xlu0 %1414
    %1416 = vrot.lane.b32.xlu0 %v1152, 96
    %v1417 = vpop.permute.xlu0 %1416
    %1418 = vrot.lane.b32.xlu0 %v1154, 96
    %v1419 = vpop.permute.xlu0 %1418
    %1420 = vrot.lane.b32.xlu0 %v1160, 96
    %v1421 = vpop.permute.xlu0 %1420
    %1422 = vrot.lane.b32.xlu0 %v1162, 96
    %v1423 = vpop.permute.xlu0 %1422
    %1424 = vrot.lane.b32.xlu0 %v1164, 96
    %v1425 = vpop.permute.xlu0 %1424
    %1426 = vrot.lane.b32.xlu0 %v1166, 96
    %v1427 = vpop.permute.xlu0 %1426
    %1428 = vrot.lane.b32.xlu0 %v1168, 96
    %v1429 = vpop.permute.xlu0 %1428
    %1430 = vrot.lane.b32.xlu0 %v1170, 96
    %v1431 = vpop.permute.xlu0 %1430
    %1432 = vrot.lane.b32.xlu0 %v1172, 96
    %v1433 = vpop.permute.xlu0 %1432
    %1434 = vrot.lane.b32.xlu0 %v1174, 96
    %v1435 = vpop.permute.xlu0 %1434
    %v1454 = vrot.slane %v1154, 1
    %v1455 = vrot.slane %v1155, 1
    %v1456 = vsel %vm208, %v1454, %v1455
    %v1457 = vrot.slane %v1174, 1
    %v1458 = vrot.slane %v1175, 1
    %v1459 = vsel %vm208, %v1457, %v1458
    %v1476 = vrot.slane %v1154, 2
    %v1477 = vrot.slane %v1155, 2
    %v1478 = vsel %vm305, %v1476, %v1477
    %v1479 = vrot.slane %v1174, 2
    %v1480 = vrot.slane %v1175, 2
    %v1481 = vsel %vm305, %v1479, %v1480
    %1482 = vrot.lane.b32.xlu0 %v1311, 32
    %v1483 = vpop.permute.xlu0 %1482
    %1484 = vrot.lane.b32.xlu0 %v1314, 32
    %v1485 = vpop.permute.xlu0 %1484
    %1486 = vrot.lane.b32.xlu0 %v1317, 32
    %v1487 = vpop.permute.xlu0 %1486
    %1488 = vrot.lane.b32.xlu0 %v1320, 32
    %v1489 = vpop.permute.xlu0 %1488
    %1490 = vrot.lane.b32.xlu0 %v1323, 32
    %v1491 = vpop.permute.xlu0 %1490
    %1492 = vrot.lane.b32.xlu0 %v1326, 32
    %v1493 = vpop.permute.xlu0 %1492
    %1494 = vrot.lane.b32.xlu0 %v1329, 32
    %v1495 = vpop.permute.xlu0 %1494
    %1496 = vrot.lane.b32.xlu0 %v1478, 32
    %v1497 = vpop.permute.xlu0 %1496
    %1498 = vrot.lane.b32.xlu0 %v1335, 32
    %v1499 = vpop.permute.xlu0 %1498
    %1500 = vrot.lane.b32.xlu0 %v1338, 32
    %v1501 = vpop.permute.xlu0 %1500
    %1502 = vrot.lane.b32.xlu0 %v1341, 32
    %v1503 = vpop.permute.xlu0 %1502
    %1504 = vrot.lane.b32.xlu0 %v1344, 32
    %v1505 = vpop.permute.xlu0 %1504
    %1506 = vrot.lane.b32.xlu0 %v1347, 32
    %v1507 = vpop.permute.xlu0 %1506
    %1508 = vrot.lane.b32.xlu0 %v1350, 32
    %v1509 = vpop.permute.xlu0 %1508
    %1510 = vrot.lane.b32.xlu0 %v1353, 32
    %v1511 = vpop.permute.xlu0 %1510
    %1512 = vrot.lane.b32.xlu0 %v1481, 32
    %v1513 = vpop.permute.xlu0 %1512
    %1532 = vrot.lane.b32.xlu0 %v1142, 64
    %v1533 = vpop.permute.xlu0 %1532
    %1534 = vrot.lane.b32.xlu0 %v1144, 64
    %v1535 = vpop.permute.xlu0 %1534
    %1536 = vrot.lane.b32.xlu0 %v1146, 64
    %v1537 = vpop.permute.xlu0 %1536
    %1538 = vrot.lane.b32.xlu0 %v1148, 64
    %v1539 = vpop.permute.xlu0 %1538
    %1540 = vrot.lane.b32.xlu0 %v1150, 64
    %v1541 = vpop.permute.xlu0 %1540
    %1542 = vrot.lane.b32.xlu0 %v1152, 64
    %v1543 = vpop.permute.xlu0 %1542
    %1544 = vrot.lane.b32.xlu0 %v1154, 64
    %v1545 = vpop.permute.xlu0 %1544
    %1546 = vrot.lane.b32.xlu0 %v1156, 64
    %v1547 = vpop.permute.xlu0 %1546
    %1548 = vrot.lane.b32.xlu0 %v1162, 64
    %v1549 = vpop.permute.xlu0 %1548
    %1550 = vrot.lane.b32.xlu0 %v1164, 64
    %v1551 = vpop.permute.xlu0 %1550
    %1552 = vrot.lane.b32.xlu0 %v1166, 64
    %v1553 = vpop.permute.xlu0 %1552
    %1554 = vrot.lane.b32.xlu0 %v1168, 64
    %v1555 = vpop.permute.xlu0 %1554
    %1556 = vrot.lane.b32.xlu0 %v1170, 64
    %v1557 = vpop.permute.xlu0 %1556
    %1558 = vrot.lane.b32.xlu0 %v1172, 64
    %v1559 = vpop.permute.xlu0 %1558
    %1560 = vrot.lane.b32.xlu0 %v1174, 64
    %v1561 = vpop.permute.xlu0 %1560
    %1562 = vrot.lane.b32.xlu0 %v1176, 64
    %v1563 = vpop.permute.xlu0 %1562
    %v1582 = vrot.slane %v1156, 1
    %v1583 = vrot.slane %v1157, 1
    %v1584 = vsel %vm208, %v1582, %v1583
    %v1585 = vrot.slane %v1176, 1
    %v1586 = vrot.slane %v1177, 1
    %v1587 = vsel %vm208, %v1585, %v1586
    %1588 = vrot.lane.b32.xlu0 %v1218, 96
    %v1589 = vpop.permute.xlu0 %1588
    %1590 = vrot.lane.b32.xlu0 %v1221, 96
    %v1591 = vpop.permute.xlu0 %1590
    %1592 = vrot.lane.b32.xlu0 %v1224, 96
    %v1593 = vpop.permute.xlu0 %1592
    %1594 = vrot.lane.b32.xlu0 %v1227, 96
    %v1595 = vpop.permute.xlu0 %1594
    %1596 = vrot.lane.b32.xlu0 %v1230, 96
    %v1597 = vpop.permute.xlu0 %1596
    %1598 = vrot.lane.b32.xlu0 %v1233, 96
    %v1599 = vpop.permute.xlu0 %1598
    %1600 = vrot.lane.b32.xlu0 %v1456, 96
    %v1601 = vpop.permute.xlu0 %1600
    %1602 = vrot.lane.b32.xlu0 %v1584, 96
    %v1603 = vpop.permute.xlu0 %1602
    %1604 = vrot.lane.b32.xlu0 %v1242, 96
    %v1605 = vpop.permute.xlu0 %1604
    %1606 = vrot.lane.b32.xlu0 %v1245, 96
    %v1607 = vpop.permute.xlu0 %1606
    %1608 = vrot.lane.b32.xlu0 %v1248, 96
    %v1609 = vpop.permute.xlu0 %1608
    %1610 = vrot.lane.b32.xlu0 %v1251, 96
    %v1611 = vpop.permute.xlu0 %1610
    %1612 = vrot.lane.b32.xlu0 %v1254, 96
    %v1613 = vpop.permute.xlu0 %1612
    %1614 = vrot.lane.b32.xlu0 %v1257, 96
    %v1615 = vpop.permute.xlu0 %1614
    %1616 = vrot.lane.b32.xlu0 %v1459, 96
    %v1617 = vpop.permute.xlu0 %1616
    %1618 = vrot.lane.b32.xlu0 %v1587, 96
    %v1619 = vpop.permute.xlu0 %1618
    %v1636 = vrot.slane %v1156, 2
    %v1637 = vrot.slane %v1157, 2
    %v1638 = vsel %vm305, %v1636, %v1637
    %v1639 = vrot.slane %v1176, 2
    %v1640 = vrot.slane %v1177, 2
    %v1641 = vsel %vm305, %v1639, %v1640
    %v1642 = vsel %vm21, %v1138, %v1259
    %v1643 = vsel %vm21, %v1140, %v1261
    %v1644 = vsel %vm21, %v1142, %v1263
    %v1645 = vsel %vm21, %v1144, %v1265
    %v1646 = vsel %vm21, %v1146, %v1267
    %v1647 = vsel %vm21, %v1148, %v1269
    %v1648 = vsel %vm21, %v1150, %v1271
    %v1649 = vsel %vm21, %v1152, %v1273
    %v1650 = vsel %vm21, %v1158, %v1275
    %v1651 = vsel %vm21, %v1160, %v1277
    %v1652 = vsel %vm21, %v1162, %v1279
    %v1653 = vsel %vm21, %v1164, %v1281
    %v1654 = vsel %vm21, %v1166, %v1283
    %v1655 = vsel %vm21, %v1168, %v1285
    %v1656 = vsel %vm21, %v1170, %v1287
    %v1657 = vsel %vm21, %v1172, %v1289
    %v1658 = vsel %vm658, %v1642, %v1355
    %v1659 = vsel %vm658, %v1643, %v1357
    %v1660 = vsel %vm658, %v1644, %v1359
    %v1661 = vsel %vm658, %v1645, %v1361
    %v1662 = vsel %vm658, %v1646, %v1363
    %v1663 = vsel %vm658, %v1647, %v1365
    %v1664 = vsel %vm658, %v1648, %v1367
    %v1665 = vsel %vm658, %v1649, %v1369
    %v1666 = vsel %vm658, %v1650, %v1371
    %v1667 = vsel %vm658, %v1651, %v1373
    %v1668 = vsel %vm658, %v1652, %v1375
    %v1669 = vsel %vm658, %v1653, %v1377
    %v1670 = vsel %vm658, %v1654, %v1379
    %v1671 = vsel %vm658, %v1655, %v1381
    %v1672 = vsel %vm658, %v1656, %v1383
    %v1673 = vsel %vm658, %v1657, %v1385
    %v1674 = vsel %vm675, %v1658, %v1405
    %v1675 = vsel %vm675, %v1659, %v1407
    %v1676 = vsel %vm675, %v1660, %v1409
    %v1677 = vsel %vm675, %v1661, %v1411
    %v1678 = vsel %vm675, %v1662, %v1413
    %v1679 = vsel %vm675, %v1663, %v1415
    %v1680 = vsel %vm675, %v1664, %v1417
    %v1681 = vsel %vm675, %v1665, %v1419
    %v1682 = vsel %vm675, %v1666, %v1421
    %v1683 = vsel %vm675, %v1667, %v1423
    %v1684 = vsel %vm675, %v1668, %v1425
    %v1685 = vsel %vm675, %v1669, %v1427
    %v1686 = vsel %vm675, %v1670, %v1429
    %v1687 = vsel %vm675, %v1671, %v1431
    %v1688 = vsel %vm675, %v1672, %v1433
    %v1689 = vsel %vm675, %v1673, %v1435
    %v1690 = vsel %vm21, %v1215, %v1483
    %v1691 = vsel %vm21, %v1218, %v1485
    %v1692 = vsel %vm21, %v1221, %v1487
    %v1693 = vsel %vm21, %v1224, %v1489
    %v1694 = vsel %vm21, %v1227, %v1491
    %v1695 = vsel %vm21, %v1230, %v1493
    %v1696 = vsel %vm21, %v1233, %v1495
    %v1697 = vsel %vm21, %v1456, %v1497
    %v1698 = vsel %vm21, %v1239, %v1499
    %v1699 = vsel %vm21, %v1242, %v1501
    %v1700 = vsel %vm21, %v1245, %v1503
    %v1701 = vsel %vm21, %v1248, %v1505
    %v1702 = vsel %vm21, %v1251, %v1507
    %v1703 = vsel %vm21, %v1254, %v1509
    %v1704 = vsel %vm21, %v1257, %v1511
    %v1705 = vsel %vm21, %v1459, %v1513
    %v1706 = vsel %vm658, %v1690, %v1533
    %v1707 = vsel %vm658, %v1691, %v1535
    %v1708 = vsel %vm658, %v1692, %v1537
    %v1709 = vsel %vm658, %v1693, %v1539
    %v1710 = vsel %vm658, %v1694, %v1541
    %v1711 = vsel %vm658, %v1695, %v1543
    %v1712 = vsel %vm658, %v1696, %v1545
    %v1713 = vsel %vm658, %v1697, %v1547
    %v1714 = vsel %vm658, %v1698, %v1549
    %v1715 = vsel %vm658, %v1699, %v1551
    %v1716 = vsel %vm658, %v1700, %v1553
    %v1717 = vsel %vm658, %v1701, %v1555
    %v1718 = vsel %vm658, %v1702, %v1557
    %v1719 = vsel %vm658, %v1703, %v1559
    %v1720 = vsel %vm658, %v1704, %v1561
    %v1721 = vsel %vm658, %v1705, %v1563
    %v1722 = vsel %vm675, %v1706, %v1589
    %v1723 = vsel %vm675, %v1707, %v1591
    %v1724 = vsel %vm675, %v1708, %v1593
    %v1725 = vsel %vm675, %v1709, %v1595
    %v1726 = vsel %vm675, %v1710, %v1597
    %v1727 = vsel %vm675, %v1711, %v1599
    %v1728 = vsel %vm675, %v1712, %v1601
    %v1729 = vsel %vm675, %v1713, %v1603
    %v1730 = vsel %vm675, %v1714, %v1605
    %v1731 = vsel %vm675, %v1715, %v1607
    %v1732 = vsel %vm675, %v1716, %v1609
    %v1733 = vsel %vm675, %v1717, %v1611
    %v1734 = vsel %vm675, %v1718, %v1613
    %v1735 = vsel %vm675, %v1719, %v1615
    %v1736 = vsel %vm675, %v1720, %v1617
    %v1737 = vsel %vm675, %v1721, %v1619
    %v1738 = vld [vmem:[%s3] sm:$0xff]
    %v1739 = vld [vmem:[%s3 + $0x8] sm:$0xff]
    %v1740 = vld [vmem:[%s3 + $0x10] sm:$0xff]
    %v1741 = vld [vmem:[%s3 + $0x18] sm:$0xff]
    %v1742 = vld [vmem:[%s3 + $0x20] sm:$0xff]
    %v1743 = vld [vmem:[%s3 + $0x28] sm:$0xff]
    %v1744 = vld [vmem:[%s3 + $0x30] sm:$0xff]
    %v1745 = vld [vmem:[%s3 + $0x38] sm:$0xff]
    %v1746 = vld [vmem:[%s3 + $0x40] sm:$0xff]
    %v1747 = vld [vmem:[%s3 + $0x48] sm:$0xff]
    %v1748 = vld [vmem:[%s3 + $0x50] sm:$0xff]
    %v1749 = vld [vmem:[%s3 + $0x58] sm:$0xff]
    %v1750 = vld [vmem:[%s3 + $0x60] sm:$0xff]
    %v1751 = vld [vmem:[%s3 + $0x68] sm:$0xff]
    %v1752 = vld [vmem:[%s3 + $0x70] sm:$0xff]
    %v1753 = vld [vmem:[%s3 + $0x78] sm:$0xff]
    %v1754 = vld [vmem:[%s3 + $0x80] sm:$0xff]
    %v1755 = vld [vmem:[%s3 + $0x88] sm:$0xff]
    %v1756 = vld [vmem:[%s3 + $0x90] sm:$0xff]
    %v1757 = vld [vmem:[%s3 + $0x98] sm:$0xff]
    %v1758 = vld [vmem:[%s3 + $0xa0] sm:$0xff]
    %v1759 = vld [vmem:[%s3 + $0xa8] sm:$0xff]
    %v1760 = vld [vmem:[%s3 + $0xb0] sm:$0xff]
    %v1761 = vld [vmem:[%s3 + $0xb8] sm:$0xff]
    %v1762 = vld [vmem:[%s3 + $0xc0] sm:$0xff]
    %v1763 = vld [vmem:[%s3 + $0xc8] sm:$0xff]
    %v1764 = vld [vmem:[%s3 + $0xd0] sm:$0xff]
    %v1765 = vld [vmem:[%s3 + $0xd8] sm:$0xff]
    %v1766 = vld [vmem:[%s3 + $0xe0] sm:$0xff]
    %v1767 = vld [vmem:[%s3 + $0xe8] sm:$0xff]
    %v1768 = vld [vmem:[%s3 + $0xf0] sm:$0xff]
    %v1769 = vld [vmem:[%s3 + $0xf8] sm:$0xff]
    %v1770 = vld [vmem:[%s3 + $0x100] sm:$0xff]
    %v1771 = vld [vmem:[%s3 + $0x108] sm:$0xff]
    %v1772 = vld [vmem:[%s3 + $0x110] sm:$0xff]
    %v1773 = vld [vmem:[%s3 + $0x118] sm:$0xff]
    %v1774 = vld [vmem:[%s4] sm:$0x1]
    %v1776 = vlaneseq
    %v1777 = vshrl.u32 %v1776, 7
    %v1778 = vsub.s32 0, %v1777
    %v1779 = vrot.slane %v1774, %v1778
    %v1781 = vsel %vm21, %v1314, 0
    %v1783 = vsel %vm21, %v1317, 0
    %v1785 = vsel %vm21, %v1320, 0
    %v1787 = vsel %vm21, %v1323, 0
    %v1789 = vsel %vm21, %v1326, 0
    %v1791 = vsel %vm21, %v1329, 0
    %v1793 = vsel %vm21, %v1478, 0
    %v1795 = vsel %vm21, %v1638, 0
    %v1797 = vsel %vm21, %v1338, 0
    %v1799 = vsel %vm21, %v1341, 0
    %v1801 = vsel %vm21, %v1344, 0
    %v1803 = vsel %vm21, %v1347, 0
    %v1805 = vsel %vm21, %v1350, 0
    %v1807 = vsel %vm21, %v1353, 0
    %v1809 = vsel %vm21, %v1481, 0
    %v1811 = vsel %vm21, %v1641, 0
    %1813 = vmatprep.subr.mxu0 0.0
    %1814 = vmatpush1.msra.mxu0 %v1738
    %1815 = vmatprep.subr.mxu0 0.0
    %1816 = vmatpush1.msra.mxu0 %v1739
    %1817 = vmatprep.subr.mxu0 0.0
    %1818 = vmatpush1.msra.mxu0 %v1740
    %1819 = vmatprep.subr.mxu0 0.0
    %1820 = vmatpush1.msra.mxu0 %v1741
    %1821 = vmatprep.subr.mxu0 0.0
    %1822 = vmatpush1.msra.mxu0 %v1742
    %1823 = vmatprep.subr.mxu0 0.0
    %1824 = vmatpush1.msra.mxu0 %v1743
    %1825 = vmatprep.subr.mxu0 0.0
    %1826 = vmatpush1.msra.mxu0 %v1744
    %1827 = vmatprep.subr.mxu0 0.0
    %1828 = vmatpush1.msra.mxu0 %v1745
    %1829 = vmatprep.subr.mxu0 0.0
    %1830 = vmatpush1.msra.mxu0 %v1746
    %1831 = vmatprep.subr.mxu0 0.0
    %1832 = vmatpush1.msra.mxu0 %v1747
    %1833 = vmatprep.subr.mxu0 0.0
    %1834 = vmatpush1.msra.mxu0 %v1748
    %1835 = vmatprep.subr.mxu0 0.0
    %1836 = vmatpush1.msra.mxu0 %v1749
    %1837 = vmatprep.subr.mxu0 0.0
    %1838 = vmatpush1.msra.mxu0 %v1750
    %1839 = vmatprep.subr.mxu0 0.0
    %1840 = vmatpush1.msra.mxu0 %v1751
    %1841 = vmatprep.subr.mxu0 0.0
    %1842 = vmatpush1.msra.mxu0 %v1752
    %1843 = vmatprep.subr.mxu0 0.0
    %1844 = vmatpush1.msra.mxu0 %v1753
    %1845 = vmatprep.subr.mxu0 0.0
    %1846 = vmatpush1.msra.mxu0 %v1754
    %1847 = vmatprep.subr.mxu0 0.0
    %1848 = vmatpush1.msra.mxu0 %v1755
    %1849 = vmatprep.subr.mxu0 0.0
    %1850 = vmatpush1.msra.mxu0 %v1756
    %1851 = vmatprep.subr.mxu0 0.0
    %1852 = vmatpush1.msra.mxu0 %v1757
    %1853 = vmatprep.subr.mxu0 0.0
    %1854 = vmatpush1.msra.mxu0 %v1758
    %1855 = vmatprep.subr.mxu0 0.0
    %1856 = vmatpush1.msra.mxu0 %v1759
    %1857 = vmatprep.subr.mxu0 0.0
    %1858 = vmatpush1.msra.mxu0 %v1760
    %1859 = vmatprep.subr.mxu0 0.0
    %1860 = vmatpush1.msra.mxu0 %v1761
    %1861 = vmatprep.subr.mxu0 0.0
    %1862 = vmatpush1.msra.mxu0 %v1762
    %1863 = vmatprep.subr.mxu0 0.0
    %1864 = vmatpush1.msra.mxu0 %v1763
    %1865 = vmatprep.subr.mxu0 0.0
    %1866 = vmatpush1.msra.mxu0 %v1764
    %1867 = vmatprep.subr.mxu0 0.0
    %1868 = vmatpush1.msra.mxu0 %v1765
    %1869 = vmatprep.subr.mxu0 0.0
    %1870 = vmatpush1.msra.mxu0 %v1766
    %1871 = vmatprep.subr.mxu0 0.0
    %1872 = vmatpush1.msra.mxu0 %v1767
    %1873 = vmatprep.subr.mxu0 0.0
    %1874 = vmatpush1.msra.mxu0 %v1768
    %1875 = vmatprep.subr.mxu0 0.0
    %1876 = vmatpush1.msra.mxu0 %v1769
    %1877 = vmatprep.mubr.f32.mxu0 %v1722
    %1878 = vmatmul.mubr.f32.gmra.mrb[0].mxu0 %v1674
    %v1879 = vpop.f32.mrb[0].mxu0
    %v1880 = vadd.f32 %v1779, %v1879
    %v1881 = vpop.f32.mrb[0].mxu0
    %1882 = vmatprep.mubr.f32.mxu0 %v1723
    %1883 = vmatmul.mubr.f32.gmra.mrb[0].mxu0 %v1675
    %v1884 = vpop.f32.mrb[0].mxu0
    %v1885 = vadd.f32 %v1779, %v1884
    %v1886 = vpop.f32.mrb[0].mxu0
    %1887 = vmatprep.mubr.f32.mxu0 %v1724
    %1888 = vmatmul.mubr.f32.gmra.mrb[0].mxu0 %v1676
    %v1889 = vpop.f32.mrb[0].mxu0
    %v1890 = vadd.f32 %v1779, %v1889
    %v1891 = vpop.f32.mrb[0].mxu0
    %1892 = vmatprep.mubr.f32.mxu0 %v1725
    %1893 = vmatmul.mubr.f32.gmra.mrb[0].mxu0 %v1677
    %v1894 = vpop.f32.mrb[0].mxu0
    %v1895 = vadd.f32 %v1779, %v1894
    %v1896 = vpop.f32.mrb[0].mxu0
    %1897 = vmatprep.mubr.f32.mxu0 %v1726
    %1898 = vmatmul.mubr.f32.gmra.mrb[0].mxu0 %v1678
    %v1899 = vpop.f32.mrb[0].mxu0
    %v1900 = vadd.f32 %v1779, %v1899
    %v1901 = vpop.f32.mrb[0].mxu0
    %1902 = vmatprep.mubr.f32.mxu0 %v1727
    %1903 = vmatmul.mubr.f32.gmra.mrb[0].mxu0 %v1679
    %v1904 = vpop.f32.mrb[0].mxu0
    %v1905 = vadd.f32 %v1779, %v1904
    %v1906 = vpop.f32.mrb[0].mxu0
    %1907 = vmatprep.mubr.f32.mxu0 %v1728
    %1908 = vmatmul.mubr.f32.gmra.mrb[0].mxu0 %v1680
    %v1909 = vpop.f32.mrb[0].mxu0
    %v1910 = vadd.f32 %v1779, %v1909
    %v1911 = vpop.f32.mrb[0].mxu0
    %1912 = vmatprep.mubr.f32.mxu0 %v1729
    %1913 = vmatmul.mubr.f32.gmra.mrb[0].mxu0 %v1681
    %v1914 = vpop.f32.mrb[0].mxu0
    %v1915 = vadd.f32 %v1779, %v1914
    %v1916 = vpop.f32.mrb[0].mxu0
    %1917 = vmatprep.mubr.f32.mxu0 %v1730
    %1918 = vmatmul.mubr.f32.gmra.mrb[0].mxu0 %v1682
    %v1919 = vpop.f32.mrb[0].mxu0
    %v1920 = vadd.f32 %v1779, %v1919
    %v1921 = vpop.f32.mrb[0].mxu0
    %1922 = vmatprep.mubr.f32.mxu0 %v1731
    %1923 = vmatmul.mubr.f32.gmra.mrb[0].mxu0 %v1683
    %v1924 = vpop.f32.mrb[0].mxu0
    %v1925 = vadd.f32 %v1779, %v1924
    %v1926 = vpop.f32.mrb[0].mxu0
    %1927 = vmatprep.mubr.f32.mxu0 %v1732
    %1928 = vmatmul.mubr.f32.gmra.mrb[0].mxu0 %v1684
    %v1929 = vpop.f32.mrb[0].mxu0
    %v1930 = vadd.f32 %v1779, %v1929
    %v1931 = vpop.f32.mrb[0].mxu0
    %1932 = vmatprep.mubr.f32.mxu0 %v1733
    %1933 = vmatmul.mubr.f32.gmra.mrb[0].mxu0 %v1685
    %v1934 = vpop.f32.mrb[0].mxu0
    %v1935 = vadd.f32 %v1779, %v1934
    %v1936 = vpop.f32.mrb[0].mxu0
    %1937 = vmatprep.mubr.f32.mxu0 %v1734
    %1938 = vmatmul.mubr.f32.gmra.mrb[0].mxu0 %v1686
    %v1939 = vpop.f32.mrb[0].mxu0
    %v1940 = vadd.f32 %v1779, %v1939
    %v1941 = vpop.f32.mrb[0].mxu0
    %1942 = vmatprep.mubr.f32.mxu0 %v1735
    %1943 = vmatmul.mubr.f32.gmra.mrb[0].mxu0 %v1687
    %v1944 = vpop.f32.mrb[0].mxu0
    %v1945 = vadd.f32 %v1779, %v1944
    %v1946 = vpop.f32.mrb[0].mxu0
    %1947 = vmatprep.mubr.f32.mxu0 %v1736
    %1948 = vmatmul.mubr.f32.gmra.mrb[0].mxu0 %v1688
    %v1949 = vpop.f32.mrb[0].mxu0
    %v1950 = vadd.f32 %v1779, %v1949
    %v1951 = vpop.f32.mrb[0].mxu0
    %1952 = vmatprep.mubr.f32.mxu0 %v1737
    %1953 = vmatmul.mubr.f32.gmra.mrb[0].mxu0 %v1689
    %v1954 = vpop.f32.mrb[0].mxu0
    %v1955 = vadd.f32 %v1779, %v1954
    %v1956 = vpop.f32.mrb[0].mxu0
    %1957 = vdwg.mxu0
    %1958 = vmatprep.subr.mxu0 0.0
    %1959 = vmatpush1.msra.mxu0 %v1770
    %1960 = vmatprep.subr.mxu0 0.0
    %1961 = vmatpush1.msra.mxu0 %v1771
    %1962 = vmatprep.subr.mxu0 0.0
    %1963 = vmatpush1.msra.mxu0 %v1772
    %1964 = vmatprep.subr.mxu0 0.0
    %1965 = vmatpush1.msra.mxu0 %v1773
    %1966 = vmatprep.subr.mxu0 0.0
    %1967 = vmatpush1.msra.mxu0 0.0
    %1968 = vmatprep.subr.mxu0 0.0
    %1969 = vmatpush1.msra.mxu0 0.0
    %1970 = vmatprep.subr.mxu0 0.0
    %1971 = vmatpush1.msra.mxu0 0.0
    %1972 = vmatprep.subr.mxu0 0.0
    %1973 = vmatpush1.msra.mxu0 0.0
    %1974 = vmatprep.subr.mxu0 0.0
    %1975 = vmatpush1.msra.mxu0 0.0
    %1976 = vmatprep.subr.mxu0 0.0
    %1977 = vmatpush1.msra.mxu0 0.0
    %1978 = vmatprep.subr.mxu0 0.0
    %1979 = vmatpush1.msra.mxu0 0.0
    %1980 = vmatprep.subr.mxu0 0.0
    %1981 = vmatpush1.msra.mxu0 0.0
    %1982 = vmatprep.subr.mxu0 0.0
    %1983 = vmatpush1.msra.mxu0 0.0
    %1984 = vmatprep.subr.mxu0 0.0
    %1985 = vmatpush1.msra.mxu0 0.0
    %1986 = vmatprep.subr.mxu0 0.0
    %1987 = vmatpush1.msra.mxu0 0.0
    %1988 = vmatprep.subr.mxu0 0.0
    %1989 = vmatpush1.msra.mxu0 0.0
    %1990 = vmatprep.subr.mxu0 0.0
    %1991 = vmatpush1.msra.mxu0 0.0
    %1992 = vmatprep.subr.mxu0 0.0
    %1993 = vmatpush1.msra.mxu0 0.0
    %1994 = vmatprep.subr.mxu0 0.0
    %1995 = vmatpush1.msra.mxu0 0.0
    %1996 = vmatprep.subr.mxu0 0.0
    %1997 = vmatpush1.msra.mxu0 0.0
    %1998 = vmatprep.subr.mxu0 0.0
    %1999 = vmatpush1.msra.mxu0 0.0
    %2000 = vmatprep.subr.mxu0 0.0
    %2001 = vmatpush1.msra.mxu0 0.0
    %2002 = vmatprep.subr.mxu0 0.0
    %2003 = vmatpush1.msra.mxu0 0.0
    %2004 = vmatprep.subr.mxu0 0.0
    %2005 = vmatpush1.msra.mxu0 0.0
    %2006 = vmatprep.subr.mxu0 0.0
    %2007 = vmatpush1.msra.mxu0 0.0
    %2008 = vmatprep.subr.mxu0 0.0
    %2009 = vmatpush1.msra.mxu0 0.0
    %2010 = vmatprep.subr.mxu0 0.0
    %2011 = vmatpush1.msra.mxu0 0.0
    %2012 = vmatprep.subr.mxu0 0.0
    %2013 = vmatpush1.msra.mxu0 0.0
    %2014 = vmatprep.subr.mxu0 0.0
    %2015 = vmatpush1.msra.mxu0 0.0
    %2016 = vmatprep.subr.mxu0 0.0
    %2017 = vmatpush1.msra.mxu0 0.0
    %2018 = vmatprep.subr.mxu0 0.0
    %2019 = vmatpush1.msra.mxu0 0.0
    %2020 = vmatprep.subr.mxu0 0.0
    %2021 = vmatpush1.msra.mxu0 0.0
    %2022 = vmatprep.mubr.f32.mxu0 0.0
    %2023 = vmatmul.mubr.f32.gmra.mrb[0].mxu0 %v1781
    %v2024 = vpop.f32.mrb[0].mxu0
    %v2025 = vadd.f32 %v1880, %v2024
    %v2026 = vpop.f32.mrb[0].mxu0
    %2027 = vmatprep.mubr.f32.mxu0 0.0
    %2028 = vmatmul.mubr.f32.gmra.mrb[0].mxu0 %v1783
    %v2029 = vpop.f32.mrb[0].mxu0
    %v2030 = vadd.f32 %v1885, %v2029
    %v2031 = vpop.f32.mrb[0].mxu0
    %2032 = vmatprep.mubr.f32.mxu0 0.0
    %2033 = vmatmul.mubr.f32.gmra.mrb[0].mxu0 %v1785
    %v2034 = vpop.f32.mrb[0].mxu0
    %v2035 = vadd.f32 %v1890, %v2034
    %v2036 = vpop.f32.mrb[0].mxu0
    %2037 = vmatprep.mubr.f32.mxu0 0.0
    %2038 = vmatmul.mubr.f32.gmra.mrb[0].mxu0 %v1787
    %v2039 = vpop.f32.mrb[0].mxu0
    %v2040 = vadd.f32 %v1895, %v2039
    %v2041 = vpop.f32.mrb[0].mxu0
    %2042 = vmatprep.mubr.f32.mxu0 0.0
    %2043 = vmatmul.mubr.f32.gmra.mrb[0].mxu0 %v1789
    %v2044 = vpop.f32.mrb[0].mxu0
    %v2045 = vadd.f32 %v1900, %v2044
    %v2046 = vpop.f32.mrb[0].mxu0
    %2047 = vmatprep.mubr.f32.mxu0 0.0
    %2048 = vmatmul.mubr.f32.gmra.mrb[0].mxu0 %v1791
    %v2049 = vpop.f32.mrb[0].mxu0
    %v2050 = vadd.f32 %v1905, %v2049
    %v2051 = vpop.f32.mrb[0].mxu0
    %2052 = vmatprep.mubr.f32.mxu0 0.0
    %2053 = vmatmul.mubr.f32.gmra.mrb[0].mxu0 %v1793
    %v2054 = vpop.f32.mrb[0].mxu0
    %v2055 = vadd.f32 %v1910, %v2054
    %v2056 = vpop.f32.mrb[0].mxu0
    %2057 = vmatprep.mubr.f32.mxu0 0.0
    %2058 = vmatmul.mubr.f32.gmra.mrb[0].mxu0 %v1795
    %v2059 = vpop.f32.mrb[0].mxu0
    %v2060 = vadd.f32 %v1915, %v2059
    %v2061 = vpop.f32.mrb[0].mxu0
    %2062 = vmatprep.mubr.f32.mxu0 0.0
    %2063 = vmatmul.mubr.f32.gmra.mrb[0].mxu0 %v1797
    %v2064 = vpop.f32.mrb[0].mxu0
    %v2065 = vadd.f32 %v1920, %v2064
    %v2066 = vpop.f32.mrb[0].mxu0
    %2067 = vmatprep.mubr.f32.mxu0 0.0
    %2068 = vmatmul.mubr.f32.gmra.mrb[0].mxu0 %v1799
    %v2069 = vpop.f32.mrb[0].mxu0
    %v2070 = vadd.f32 %v1925, %v2069
    %v2071 = vpop.f32.mrb[0].mxu0
    %2072 = vmatprep.mubr.f32.mxu0 0.0
    %2073 = vmatmul.mubr.f32.gmra.mrb[0].mxu0 %v1801
    %v2074 = vpop.f32.mrb[0].mxu0
    %v2075 = vadd.f32 %v1930, %v2074
    %v2076 = vpop.f32.mrb[0].mxu0
    %2077 = vmatprep.mubr.f32.mxu0 0.0
    %2078 = vmatmul.mubr.f32.gmra.mrb[0].mxu0 %v1803
    %v2079 = vpop.f32.mrb[0].mxu0
    %v2080 = vadd.f32 %v1935, %v2079
    %v2081 = vpop.f32.mrb[0].mxu0
    %2082 = vmatprep.mubr.f32.mxu0 0.0
    %2083 = vmatmul.mubr.f32.gmra.mrb[0].mxu0 %v1805
    %v2084 = vpop.f32.mrb[0].mxu0
    %v2085 = vadd.f32 %v1940, %v2084
    %v2086 = vpop.f32.mrb[0].mxu0
    %2087 = vmatprep.mubr.f32.mxu0 0.0
    %2088 = vmatmul.mubr.f32.gmra.mrb[0].mxu0 %v1807
    %v2089 = vpop.f32.mrb[0].mxu0
    %v2090 = vadd.f32 %v1945, %v2089
    %v2091 = vpop.f32.mrb[0].mxu0
    %2092 = vmatprep.mubr.f32.mxu0 0.0
    %2093 = vmatmul.mubr.f32.gmra.mrb[0].mxu0 %v1809
    %v2094 = vpop.f32.mrb[0].mxu0
    %v2095 = vadd.f32 %v1950, %v2094
    %v2096 = vpop.f32.mrb[0].mxu0
    %2097 = vmatprep.mubr.f32.mxu0 0.0
    %2098 = vmatmul.mubr.f32.gmra.mrb[0].mxu0 %v1811
    %v2099 = vpop.f32.mrb[0].mxu0
    %v2100 = vadd.f32 %v1955, %v2099
    %v2101 = vpop.f32.mrb[0].mxu0
    %2102 = vdwg.mxu0
    %v2103 = vadd.f32 %v2025, %v103
    %v2104 = vadd.f32 %v2030, %v104
    %v2105 = vadd.f32 %v2035, %v105
    %v2106 = vadd.f32 %v2040, %v106
    %v2107 = vadd.f32 %v2045, %v107
    %v2108 = vadd.f32 %v2050, %v108
    %v2109 = vadd.f32 %v2055, %v109
    %v2110 = vadd.f32 %v2060, %v110
    %v2111 = vadd.f32 %v2065, %v111
    %v2112 = vadd.f32 %v2070, %v112
    %v2113 = vadd.f32 %v2075, %v113
    %v2114 = vadd.f32 %v2080, %v114
    %v2115 = vadd.f32 %v2085, %v115
    %v2116 = vadd.f32 %v2090, %v116
    %v2117 = vadd.f32 %v2095, %v117
    %v2118 = vadd.f32 %v2100, %v118
    %v2119 = vmax.f32 %v2103, 0.0
    %v2120 = vmax.f32 %v2104, 0.0
    %v2121 = vmax.f32 %v2105, 0.0
    %v2122 = vmax.f32 %v2106, 0.0
    %v2123 = vmax.f32 %v2107, 0.0
    %v2124 = vmax.f32 %v2108, 0.0
    %v2125 = vmax.f32 %v2109, 0.0
    %v2126 = vmax.f32 %v2110, 0.0
    %v2127 = vmax.f32 %v2111, 0.0
    %v2128 = vmax.f32 %v2112, 0.0
    %v2129 = vmax.f32 %v2113, 0.0
    %v2130 = vmax.f32 %v2114, 0.0
    %v2131 = vmax.f32 %v2115, 0.0
    %v2132 = vmax.f32 %v2116, 0.0
    %v2133 = vmax.f32 %v2117, 0.0
    %v2134 = vmax.f32 %v2118, 0.0
    %2135 = vst.msk [vmem:[#allocation4] sm:$0xff] %vm21, %v2119
    %2136 = vst.msk [vmem:[#allocation4 + $0x8] sm:$0xff] %vm21, %v2120
    %2137 = vst.msk [vmem:[#allocation4 + $0x10] sm:$0xff] %vm21, %v2121
    %2138 = vst.msk [vmem:[#allocation4 + $0x18] sm:$0xff] %vm21, %v2122
    %2139 = vst.msk [vmem:[#allocation4 + $0x20] sm:$0xff] %vm21, %v2123
    %2140 = vst.msk [vmem:[#allocation4 + $0x28] sm:$0xff] %vm21, %v2124
    %2141 = vst.msk [vmem:[#allocation4 + $0x30] sm:$0xff] %vm21, %v2125
    %2142 = vst.msk [vmem:[#allocation4 + $0x38] sm:$0xff] %vm21, %v2126
    %2143 = vst.msk [vmem:[#allocation4 + $0x40] sm:$0xff] %vm21, %v2127
    %2144 = vst.msk [vmem:[#allocation4 + $0x48] sm:$0xff] %vm21, %v2128
    %2145 = vst.msk [vmem:[#allocation4 + $0x50] sm:$0xff] %vm21, %v2129
    %2146 = vst.msk [vmem:[#allocation4 + $0x58] sm:$0xff] %vm21, %v2130
    %2147 = vst.msk [vmem:[#allocation4 + $0x60] sm:$0xff] %vm21, %v2131
    %2148 = vst.msk [vmem:[#allocation4 + $0x68] sm:$0xff] %vm21, %v2132
    %2149 = vst.msk [vmem:[#allocation4 + $0x70] sm:$0xff] %vm21, %v2133
    %2150 = vst.msk [vmem:[#allocation4 + $0x78] sm:$0xff] %vm21, %v2134
    // Predicated region
    $region22: #{residual_block_forward.1} parent=1 // pred_check
      _
    $region23: #{residual_block_forward.1} parent=1 // pred_check_branch
      %2152 = sbr.rel (0) target = $region25
    $region24: #{residual_block_forward.1} parent=1 // pred_region
      %s2154 = ssub.s32 2048, 2048
      %2155 = vsyncadd [#allocation5], %s2154
      %s2156 = sshll.u32 [#allocation4], 4
      %s2157 = int_to_ptr.vmem [resolvable:$true] %s2156
      %2162 = dma.vmem_to_hbm [thread:$0]  %s2157, 2048, %s5, [#allocation5], 128, 128, 8
    $region25: #{residual_block_forward.1} parent=1 // pred_fallthru
      _
    // Predicated region
    $region26: #{residual_block_forward.1} parent=1 // pred_check
      _
    $region27: #{residual_block_forward.1} parent=1 // pred_check_branch
      %2164 = sbr.rel (0) target = $region29
    $region28: #{residual_block_forward.1} parent=1 // pred_region
      %2165 = dma.done [#allocation5], 2048
    $region29: #{residual_block_forward.1} parent=1 // pred_fallthru
      _
    %2166 = vsyncpa [#allocation5], 1

</llo_original>
